<compile_context>
chip_gen: v6e
topology: v6e:2x2x1
jax: 0.10.0
libtpu: 0.0.40
codegen_flags: <defaults>
</compile_context>

<pallas_src>
import functools
import math

import jax
import jax.numpy as jnp
from jax import lax
from jax.experimental import pallas as pl
from jax.experimental.pallas import tpu as pltpu


def _pick_l_tile(L, max_tile=512):
    """Largest L tile (multiple of 8, divisor of L) not exceeding max_tile."""
    if L <= max_tile:
        return L
    for t in range(max_tile, 7, -8):
        if L % t == 0:
            return t
    return L


def _linear_attn_kernel(q_ref, k_ref, v_ref, wk_ref, wv_ref, o_ref,
                        kp_ref, vp_ref, *, scale, n_heads, e_dim, d_dim):
    # q_ref : (1, L_T, H*E)  bf16   (head-packed query tile)
    # k_ref : (1, S,  H*E)   bf16   (head-packed keys, whole sequence)
    # v_ref : (1, S,  H*D)   bf16   (head-packed values, whole sequence)
    # wk_ref, wv_ref : (k, S) bf16  (Linformer projection weights)
    # o_ref : (1, L_T, H*D)  f32    (head-packed output tile)
    # kp_ref: VMEM (k, H*E)  bf16 scratch (scale already folded in)
    # vp_ref: VMEM (k, H*D)  bf16 scratch

    @pl.when(pl.program_id(1) == 0)
    def _project():
        # Lane-dense projections over the sequence axis for ALL heads at once,
        # computed once per batch element and cached across the L tiles.
        kp = jnp.dot(wk_ref[...], k_ref[0],
                     preferred_element_type=jnp.float32)      # (k, H*E) f32
        vp = jnp.dot(wv_ref[...], v_ref[0],
                     preferred_element_type=jnp.float32)      # (k, H*D) f32
        # Fold the softmax scale into the cached K projection (cheaper than
        # scaling q per tile or the (L, k) scores).
        kp_ref[...] = (kp * scale).astype(kp_ref.dtype)
        vp_ref[...] = vp.astype(vp_ref.dtype)

    outs = []
    for h in range(n_heads):                                   # static unroll
        qh = q_ref[0, :, h * e_dim:(h + 1) * e_dim]            # (L_T, E) bf16
        kph = kp_ref[:, h * e_dim:(h + 1) * e_dim]             # (k,  E)  bf16
        vph = vp_ref[:, h * d_dim:(h + 1) * d_dim]             # (k,  D)  bf16

        # scores = (scale * Q) @ K'^T, contracted over E, f32 accumulation.
        scores = lax.dot_general(
            qh, kph, (((1,), (1,)), ((), ())),
            preferred_element_type=jnp.float32)                # (L_T, k) f32

        # Numerically stable softmax over the projection dimension.
        m = jnp.max(scores, axis=-1, keepdims=True)
        p = jnp.exp(scores - m)
        denom = jnp.sum(p, axis=-1, keepdims=True)
        a = p * pl.reciprocal(denom, approx=True)

        outs.append(jnp.dot(a.astype(vph.dtype), vph,
                            preferred_element_type=jnp.float32))  # (L_T, D)

    # Single lane-dense store of the head-packed output tile.
    o_ref[0] = jnp.concatenate(outs, axis=-1).astype(o_ref.dtype)


def linear_attention(queries, keys, values, w_k, w_v, scale=None, l_tile=None):
    """queries: (B, L, H, E), keys: (B, S, H, E), values: (B, S, H, D),
    w_k, w_v: (k, S).  Returns (B, L, H, D) in float32."""
    B, L, H, E = queries.shape
    _, S, _, D = values.shape
    kproj = w_k.shape[0]
    scale = scale if scale is not None else 1.0 / math.sqrt(E)

    if l_tile is None:
        l_tile = _pick_l_tile(L)
    assert L % l_tile == 0
    n_lt = L // l_tile

    # Head-packed, transpose-free layouts (pure reshapes, no HBM shuffles) and
    # bf16 MXU inputs.
    q2 = queries.reshape(B, L, H * E).astype(jnp.bfloat16)
    k2 = keys.reshape(B, S, H * E).astype(jnp.bfloat16)
    v2 = values.reshape(B, S, H * D).astype(jnp.bfloat16)
    wk = w_k.astype(jnp.bfloat16)
    wv = w_v.astype(jnp.bfloat16)

    kernel = functools.partial(_linear_attn_kernel, scale=scale,
                               n_heads=H, e_dim=E, d_dim=D)

    def _call(single_buffer_weights):
        w_kwargs = ({"pipeline_mode": pl.Buffered(1)}
                    if single_buffer_weights else {})
        wk_spec = pl.BlockSpec((kproj, S), lambda b, lt: (0, 0), **w_kwargs)
        wv_spec = pl.BlockSpec((kproj, S), lambda b, lt: (0, 0), **w_kwargs)
        grid_spec = pltpu.PrefetchScalarGridSpec(
            num_scalar_prefetch=0,
            grid=(B, n_lt),
            in_specs=[
                pl.BlockSpec((1, l_tile, H * E), lambda b, lt: (b, lt, 0)),
                pl.BlockSpec((1, S, H * E), lambda b, lt: (b, 0, 0)),
                pl.BlockSpec((1, S, H * D), lambda b, lt: (b, 0, 0)),
                wk_spec,
                wv_spec,
            ],
            out_specs=pl.BlockSpec((1, l_tile, H * D),
                                   lambda b, lt: (b, lt, 0)),
            scratch_shapes=[
                pltpu.VMEM((kproj, H * E), jnp.bfloat16),   # cached K'
                pltpu.VMEM((kproj, H * D), jnp.bfloat16),   # cached V'
            ],
        )
        return pl.pallas_call(
            kernel,
            out_shape=jax.ShapeDtypeStruct((B, L, H * D), jnp.float32),
            grid_spec=grid_spec,
            compiler_params=pltpu.CompilerParams(
                dimension_semantics=("parallel", "arbitrary")),
        )(q2, k2, v2, wk, wv)

    try:
        out = _call(True)            # single-buffered constant weights
    except Exception:
        out = _call(False)           # fallback: default (double) buffering

    # Free reshape back to the PyTorch output layout (B, L, H, D).
    return out.reshape(B, L, H, D)


def linear_attention_ref(queries, keys, values, w_k, w_v, scale=None):
    """Pure-JAX f32 reference mirroring the PyTorch forward (eval, no mask)."""
    B, L, H, E = queries.shape
    scale = scale if scale is not None else 1.0 / math.sqrt(E)
    k_p = jnp.einsum('ks,bshe->bhke', w_k, keys)      # (B, H, k, E)
    v_p = jnp.einsum('ks,bshd->bhkd', w_v, values)    # (B, H, k, D)
    q = jnp.transpose(queries, (0, 2, 1, 3))          # (B, H, L, E)
    scores = jnp.einsum('bhle,bhke->bhlk', q, k_p)
    a = jax.nn.softmax(scale * scores, axis=-1)
    out = jnp.einsum('bhlk,bhkd->bhld', a, v_p)
    return jnp.transpose(out, (0, 2, 1, 3))           # (B, L, H, D)


if __name__ == "__main__":
    # Small shapes consistent with the module; H*E = 128 is lane-dense.
    B, L, H, E = 2, 16, 4, 32
    S, D = L, E            # keys/values share seq-len and feature dim here
    k_dim = 8              # Linformer projection dimension

    key = jax.random.PRNGKey(0)
    kq, kk_, kv, kwk, kwv = jax.random.split(key, 5)

    queries = jax.random.normal(kq, (B, L, H, E), dtype=jnp.float32)
    keys_in = jax.random.normal(kk_, (B, S, H, E), dtype=jnp.float32)
    values = jax.random.normal(kv, (B, S, H, D), dtype=jnp.float32)

    # nn.Linear(seq_len, k, bias=False)-style weights: shape (k, seq_len),
    # uniform in +-1/sqrt(seq_len).
    bound = 1.0 / math.sqrt(S)
    w_k = jax.random.uniform(kwk, (k_dim, S), jnp.float32, -bound, bound)
    w_v = jax.random.uniform(kwv, (k_dim, S), jnp.float32, -bound, bound)

    out = linear_attention(queries, keys_in, values, w_k, w_v)
    out = jax.block_until_ready(out)

    ref = linear_attention_ref(queries, keys_in, values, w_k, w_v)
    assert out.shape == (B, L, H, D)
    max_err = float(jnp.max(jnp.abs(out - ref)))
    # bf16 MXU inputs + approx reciprocal -> bf16-level agreement with the
    # f32 reference.
    assert jnp.allclose(out, ref, atol=5e-2, rtol=5e-2), max_err

    print("KERNEL_OK")
</pallas_src>

<mosaic_0001>
module attributes {stable_mosaic.version = 11 : i64} {
  func.func @_linear_attn_kernel(%arg0: i32, %arg1: i32, %arg2: memref<1x16x128xbf16, #tpu.memory_space<vmem>>, %arg3: memref<1x16x128xbf16, #tpu.memory_space<vmem>>, %arg4: memref<1x16x128xbf16, #tpu.memory_space<vmem>>, %arg5: memref<8x16xbf16, #tpu.memory_space<vmem>>, %arg6: memref<8x16xbf16, #tpu.memory_space<vmem>>, %arg7: memref<1x16x128xf32, #tpu.memory_space<vmem>>, %arg8: memref<8x128xbf16, #tpu.memory_space<vmem>>, %arg9: memref<8x128xbf16, #tpu.memory_space<vmem>>) attributes {dimension_semantics = [#tpu.dimension_semantics<parallel>, #tpu.dimension_semantics<arbitrary>], iteration_bounds = array<i64: 2, 1>, scalar_prefetch = 0 : i64, scratch_operands = 2 : i64, tpu.core_type = #tpu.core_type<tc>, window_params = [{transform_indices = @transform_0, window_bounds = array<i64: 1, 16, 128>}, {transform_indices = @transform_1, window_bounds = array<i64: 1, 16, 128>}, {transform_indices = @transform_2, window_bounds = array<i64: 1, 16, 128>}, {pipeline_mode = #tpu.pipeline_mode<synchronous>, transform_indices = @transform_3, window_bounds = array<i64: 8, 16>}, {pipeline_mode = #tpu.pipeline_mode<synchronous>, transform_indices = @transform_4, window_bounds = array<i64: 8, 16>}, {transform_indices = @transform_5, window_bounds = array<i64: 1, 16, 128>}]} {
    %c0_i32 = arith.constant 0 : i32
    %0 = arith.cmpi eq, %arg1, %c0_i32 : i32
    %1 = arith.extui %0 : i1 to i32
    %c0_i32_0 = arith.constant 0 : i32
    %2 = arith.cmpi ne, %1, %c0_i32_0 : i32
    scf.if %2 {
      %c0_43 = arith.constant 0 : index
      %c0_44 = arith.constant 0 : index
      %75 = vector.load %arg5[%c0_43, %c0_44] : memref<8x16xbf16, #tpu.memory_space<vmem>>, vector<8x16xbf16>
      %c0_45 = arith.constant 0 : index
      %c0_46 = arith.constant 0 : index
      %c0_47 = arith.constant 0 : index
      %76 = vector.load %arg3[%c0_45, %c0_46, %c0_47] : memref<1x16x128xbf16, #tpu.memory_space<vmem>>, vector<1x16x128xbf16>
      %77 = vector.shape_cast %76 : vector<1x16x128xbf16> to vector<16x128xbf16>
      %cst_48 = arith.constant dense<0.000000e+00> : vector<8x128xf32>
      %78 = tpu.matmul %75, %77, %cst_48 {dimension_numbers = #tpu.dot_dimension_numbers<[1], [0], [0], [1], [0, 0, 1, 1], [], []>} : vector<8x16xbf16>, vector<16x128xbf16>, vector<8x128xf32> -> vector<8x128xf32>
      %c0_49 = arith.constant 0 : index
      %c0_50 = arith.constant 0 : index
      %79 = vector.load %arg6[%c0_49, %c0_50] : memref<8x16xbf16, #tpu.memory_space<vmem>>, vector<8x16xbf16>
      %c0_51 = arith.constant 0 : index
      %c0_52 = arith.constant 0 : index
      %c0_53 = arith.constant 0 : index
      %80 = vector.load %arg4[%c0_51, %c0_52, %c0_53] : memref<1x16x128xbf16, #tpu.memory_space<vmem>>, vector<1x16x128xbf16>
      %81 = vector.shape_cast %80 : vector<1x16x128xbf16> to vector<16x128xbf16>
      %cst_54 = arith.constant dense<0.000000e+00> : vector<8x128xf32>
      %82 = tpu.matmul %79, %81, %cst_54 {dimension_numbers = #tpu.dot_dimension_numbers<[1], [0], [0], [1], [0, 0, 1, 1], [], []>} : vector<8x16xbf16>, vector<16x128xbf16>, vector<8x128xf32> -> vector<8x128xf32>
      %cst_55 = arith.constant 0.176776692 : f32
      %83 = vector.broadcast %cst_55 : f32 to vector<8x128xf32>
      %84 = arith.mulf %78, %83 : vector<8x128xf32>
      %85 = arith.truncf %84 : vector<8x128xf32> to vector<8x128xbf16>
      %c0_56 = arith.constant 0 : index
      %c0_57 = arith.constant 0 : index
      %86 = vector.load %arg8[%c0_56, %c0_57] : memref<8x128xbf16, #tpu.memory_space<vmem>>, vector<8x128xbf16>
      tpu.vector_store %arg8[%c0_56, %c0_57], %85 {strides = array<i32>} : memref<8x128xbf16, #tpu.memory_space<vmem>>, vector<8x128xbf16>,
      %87 = arith.truncf %82 : vector<8x128xf32> to vector<8x128xbf16>
      %c0_58 = arith.constant 0 : index
      %c0_59 = arith.constant 0 : index
      %88 = vector.load %arg9[%c0_58, %c0_59] : memref<8x128xbf16, #tpu.memory_space<vmem>>, vector<8x128xbf16>
      tpu.vector_store %arg9[%c0_58, %c0_59], %87 {strides = array<i32>} : memref<8x128xbf16, #tpu.memory_space<vmem>>, vector<8x128xbf16>,
    } else {
    }
    %c0 = arith.constant 0 : index
    %c0_1 = arith.constant 0 : index
    %c0_2 = arith.constant 0 : index
    %3 = vector.load %arg2[%c0, %c0_1, %c0_2] : memref<1x16x128xbf16, #tpu.memory_space<vmem>>, vector<1x16x32xbf16>
    %4 = vector.shape_cast %3 : vector<1x16x32xbf16> to vector<16x32xbf16>
    %c0_3 = arith.constant 0 : index
    %c0_4 = arith.constant 0 : index
    %5 = vector.load %arg8[%c0_3, %c0_4] : memref<8x128xbf16, #tpu.memory_space<vmem>>, vector<8x32xbf16>
    %c0_5 = arith.constant 0 : index
    %c0_6 = arith.constant 0 : index
    %6 = vector.load %arg9[%c0_5, %c0_6] : memref<8x128xbf16, #tpu.memory_space<vmem>>, vector<8x32xbf16>
    %cst = arith.constant dense<0.000000e+00> : vector<16x8xf32>
    %7 = tpu.matmul %4, %5, %cst {dimension_numbers = #tpu.dot_dimension_numbers<[1], [1], [0], [0], [0, 0, 1, 0], [], []>} : vector<16x32xbf16>, vector<8x32xbf16>, vector<16x8xf32> -> vector<16x8xf32>
    %cst_7 = arith.constant dense<0xFF800000> : vector<16xf32>
    %8 = vector.multi_reduction <maximumf>, %7, %cst_7 [1] : vector<16x8xf32> to vector<16xf32>
    %9 = vector.shape_cast %8 : vector<16xf32> to vector<16x1xf32>
    %10 = vector.broadcast %9 : vector<16x1xf32> to vector<16x8xf32>
    %11 = arith.subf %7, %10 : vector<16x8xf32>
    %12 = math.exp %11 : vector<16x8xf32>
    %cst_8 = arith.constant dense<0.000000e+00> : vector<16xf32>
    %13 = vector.multi_reduction <add>, %12, %cst_8 [1] : vector<16x8xf32> to vector<16xf32>
    %14 = vector.shape_cast %13 : vector<16xf32> to vector<16x1xf32>
    %15 = tpu.reciprocal %14 {approx = true} : vector<16x1xf32> -> vector<16x1xf32>
    %16 = vector.broadcast %15 : vector<16x1xf32> to vector<16x8xf32>
    %17 = arith.mulf %12, %16 : vector<16x8xf32>
    %18 = arith.truncf %17 : vector<16x8xf32> to vector<16x8xbf16>
    %cst_9 = arith.constant dense<0.000000e+00> : vector<16x32xf32>
    %19 = tpu.matmul %18, %6, %cst_9 {dimension_numbers = #tpu.dot_dimension_numbers<[1], [0], [0], [1], [0, 0, 1, 1], [], []>} : vector<16x8xbf16>, vector<8x32xbf16>, vector<16x32xf32> -> vector<16x32xf32>
    %c0_10 = arith.constant 0 : index
    %c0_11 = arith.constant 0 : index
    %c32 = arith.constant 32 : index
    %20 = vector.load %arg2[%c0_10, %c0_11, %c32] : memref<1x16x128xbf16, #tpu.memory_space<vmem>>, vector<1x16x32xbf16>
    %21 = vector.shape_cast %20 : vector<1x16x32xbf16> to vector<16x32xbf16>
    %c0_12 = arith.constant 0 : index
    %c32_13 = arith.constant 32 : index
    %22 = vector.load %arg8[%c0_12, %c32_13] : memref<8x128xbf16, #tpu.memory_space<vmem>>, vector<8x32xbf16>
    %c0_14 = arith.constant 0 : index
    %c32_15 = arith.constant 32 : index
    %23 = vector.load %arg9[%c0_14, %c32_15] : memref<8x128xbf16, #tpu.memory_space<vmem>>, vector<8x32xbf16>
    %cst_16 = arith.constant dense<0.000000e+00> : vector<16x8xf32>
    %24 = tpu.matmul %21, %22, %cst_16 {dimension_numbers = #tpu.dot_dimension_numbers<[1], [1], [0], [0], [0, 0, 1, 0], [], []>} : vector<16x32xbf16>, vector<8x32xbf16>, vector<16x8xf32> -> vector<16x8xf32>
    %cst_17 = arith.constant dense<0xFF800000> : vector<16xf32>
    %25 = vector.multi_reduction <maximumf>, %24, %cst_17 [1] : vector<16x8xf32> to vector<16xf32>
    %26 = vector.shape_cast %25 : vector<16xf32> to vector<16x1xf32>
    %27 = vector.broadcast %26 : vector<16x1xf32> to vector<16x8xf32>
    %28 = arith.subf %24, %27 : vector<16x8xf32>
    %29 = math.exp %28 : vector<16x8xf32>
    %cst_18 = arith.constant dense<0.000000e+00> : vector<16xf32>
    %30 = vector.multi_reduction <add>, %29, %cst_18 [1] : vector<16x8xf32> to vector<16xf32>
    %31 = vector.shape_cast %30 : vector<16xf32> to vector<16x1xf32>
    %32 = tpu.reciprocal %31 {approx = true} : vector<16x1xf32> -> vector<16x1xf32>
    %33 = vector.broadcast %32 : vector<16x1xf32> to vector<16x8xf32>
    %34 = arith.mulf %29, %33 : vector<16x8xf32>
    %35 = arith.truncf %34 : vector<16x8xf32> to vector<16x8xbf16>
    %cst_19 = arith.constant dense<0.000000e+00> : vector<16x32xf32>
    %36 = tpu.matmul %35, %23, %cst_19 {dimension_numbers = #tpu.dot_dimension_numbers<[1], [0], [0], [1], [0, 0, 1, 1], [], []>} : vector<16x8xbf16>, vector<8x32xbf16>, vector<16x32xf32> -> vector<16x32xf32>
    %c0_20 = arith.constant 0 : index
    %c0_21 = arith.constant 0 : index
    %c64 = arith.constant 64 : index
    %37 = vector.load %arg2[%c0_20, %c0_21, %c64] : memref<1x16x128xbf16, #tpu.memory_space<vmem>>, vector<1x16x32xbf16>
    %38 = vector.shape_cast %37 : vector<1x16x32xbf16> to vector<16x32xbf16>
    %c0_22 = arith.constant 0 : index
    %c64_23 = arith.constant 64 : index
    %39 = vector.load %arg8[%c0_22, %c64_23] : memref<8x128xbf16, #tpu.memory_space<vmem>>, vector<8x32xbf16>
    %c0_24 = arith.constant 0 : index
    %c64_25 = arith.constant 64 : index
    %40 = vector.load %arg9[%c0_24, %c64_25] : memref<8x128xbf16, #tpu.memory_space<vmem>>, vector<8x32xbf16>
    %cst_26 = arith.constant dense<0.000000e+00> : vector<16x8xf32>
    %41 = tpu.matmul %38, %39, %cst_26 {dimension_numbers = #tpu.dot_dimension_numbers<[1], [1], [0], [0], [0, 0, 1, 0], [], []>} : vector<16x32xbf16>, vector<8x32xbf16>, vector<16x8xf32> -> vector<16x8xf32>
    %cst_27 = arith.constant dense<0xFF800000> : vector<16xf32>
    %42 = vector.multi_reduction <maximumf>, %41, %cst_27 [1] : vector<16x8xf32> to vector<16xf32>
    %43 = vector.shape_cast %42 : vector<16xf32> to vector<16x1xf32>
    %44 = vector.broadcast %43 : vector<16x1xf32> to vector<16x8xf32>
    %45 = arith.subf %41, %44 : vector<16x8xf32>
    %46 = math.exp %45 : vector<16x8xf32>
    %cst_28 = arith.constant dense<0.000000e+00> : vector<16xf32>
    %47 = vector.multi_reduction <add>, %46, %cst_28 [1] : vector<16x8xf32> to vector<16xf32>
    %48 = vector.shape_cast %47 : vector<16xf32> to vector<16x1xf32>
    %49 = tpu.reciprocal %48 {approx = true} : vector<16x1xf32> -> vector<16x1xf32>
    %50 = vector.broadcast %49 : vector<16x1xf32> to vector<16x8xf32>
    %51 = arith.mulf %46, %50 : vector<16x8xf32>
    %52 = arith.truncf %51 : vector<16x8xf32> to vector<16x8xbf16>
    %cst_29 = arith.constant dense<0.000000e+00> : vector<16x32xf32>
    %53 = tpu.matmul %52, %40, %cst_29 {dimension_numbers = #tpu.dot_dimension_numbers<[1], [0], [0], [1], [0, 0, 1, 1], [], []>} : vector<16x8xbf16>, vector<8x32xbf16>, vector<16x32xf32> -> vector<16x32xf32>
    %c0_30 = arith.constant 0 : index
    %c0_31 = arith.constant 0 : index
    %c96 = arith.constant 96 : index
    %54 = vector.load %arg2[%c0_30, %c0_31, %c96] : memref<1x16x128xbf16, #tpu.memory_space<vmem>>, vector<1x16x32xbf16>
    %55 = vector.shape_cast %54 : vector<1x16x32xbf16> to vector<16x32xbf16>
    %c0_32 = arith.constant 0 : index
    %c96_33 = arith.constant 96 : index
    %56 = vector.load %arg8[%c0_32, %c96_33] : memref<8x128xbf16, #tpu.memory_space<vmem>>, vector<8x32xbf16>
    %c0_34 = arith.constant 0 : index
    %c96_35 = arith.constant 96 : index
    %57 = vector.load %arg9[%c0_34, %c96_35] : memref<8x128xbf16, #tpu.memory_space<vmem>>, vector<8x32xbf16>
    %cst_36 = arith.constant dense<0.000000e+00> : vector<16x8xf32>
    %58 = tpu.matmul %55, %56, %cst_36 {dimension_numbers = #tpu.dot_dimension_numbers<[1], [1], [0], [0], [0, 0, 1, 0], [], []>} : vector<16x32xbf16>, vector<8x32xbf16>, vector<16x8xf32> -> vector<16x8xf32>
    %cst_37 = arith.constant dense<0xFF800000> : vector<16xf32>
    %59 = vector.multi_reduction <maximumf>, %58, %cst_37 [1] : vector<16x8xf32> to vector<16xf32>
    %60 = vector.shape_cast %59 : vector<16xf32> to vector<16x1xf32>
    %61 = vector.broadcast %60 : vector<16x1xf32> to vector<16x8xf32>
    %62 = arith.subf %58, %61 : vector<16x8xf32>
    %63 = math.exp %62 : vector<16x8xf32>
    %cst_38 = arith.constant dense<0.000000e+00> : vector<16xf32>
    %64 = vector.multi_reduction <add>, %63, %cst_38 [1] : vector<16x8xf32> to vector<16xf32>
    %65 = vector.shape_cast %64 : vector<16xf32> to vector<16x1xf32>
    %66 = tpu.reciprocal %65 {approx = true} : vector<16x1xf32> -> vector<16x1xf32>
    %67 = vector.broadcast %66 : vector<16x1xf32> to vector<16x8xf32>
    %68 = arith.mulf %63, %67 : vector<16x8xf32>
    %69 = arith.truncf %68 : vector<16x8xf32> to vector<16x8xbf16>
    %cst_39 = arith.constant dense<0.000000e+00> : vector<16x32xf32>
    %70 = tpu.matmul %69, %57, %cst_39 {dimension_numbers = #tpu.dot_dimension_numbers<[1], [0], [0], [1], [0, 0, 1, 1], [], []>} : vector<16x8xbf16>, vector<8x32xbf16>, vector<16x32xf32> -> vector<16x32xf32>
    %71 = tpu.concatenate %19, %36, %53, %70 in 1 : vector<16x32xf32>, vector<16x32xf32>, vector<16x32xf32>, vector<16x32xf32> -> vector<16x128xf32>
    %c0_40 = arith.constant 0 : index
    %c0_41 = arith.constant 0 : index
    %c0_42 = arith.constant 0 : index
    %72 = vector.load %arg7[%c0_40, %c0_41, %c0_42] : memref<1x16x128xf32, #tpu.memory_space<vmem>>, vector<1x16x128xf32>
    %73 = vector.shape_cast %72 : vector<1x16x128xf32> to vector<16x128xf32>
    %74 = vector.shape_cast %71 : vector<16x128xf32> to vector<1x16x128xf32>
    tpu.vector_store %arg7[%c0_40, %c0_41, %c0_42], %74 {strides = array<i32>} : memref<1x16x128xf32, #tpu.memory_space<vmem>>, vector<1x16x128xf32>,
    return
  }
  func.func @transform_0(%arg0: i32, %arg1: i32) -> (i32, i32, i32) {
    %c0_i32 = arith.constant 0 : i32
    %c0_i32_0 = arith.constant 0 : i32
    return %arg0, %arg1, %c0_i32 : i32, i32, i32
  }
  func.func @transform_1(%arg0: i32, %arg1: i32) -> (i32, i32, i32) {
    %c0_i32 = arith.constant 0 : i32
    %c0_i32_0 = arith.constant 0 : i32
    %c0_i32_1 = arith.constant 0 : i32
    return %arg0, %c0_i32, %c0_i32_0 : i32, i32, i32
  }
  func.func @transform_2(%arg0: i32, %arg1: i32) -> (i32, i32, i32) {
    %c0_i32 = arith.constant 0 : i32
    %c0_i32_0 = arith.constant 0 : i32
    %c0_i32_1 = arith.constant 0 : i32
    return %arg0, %c0_i32, %c0_i32_0 : i32, i32, i32
  }
  func.func @transform_3(%arg0: i32, %arg1: i32) -> (i32, i32) {
    %c0_i32 = arith.constant 0 : i32
    %c0_i32_0 = arith.constant 0 : i32
    %c0_i32_1 = arith.constant 0 : i32
    return %c0_i32, %c0_i32_0 : i32, i32
  }
  func.func @transform_4(%arg0: i32, %arg1: i32) -> (i32, i32) {
    %c0_i32 = arith.constant 0 : i32
    %c0_i32_0 = arith.constant 0 : i32
    %c0_i32_1 = arith.constant 0 : i32
    return %c0_i32, %c0_i32_0 : i32, i32
  }
  func.func @transform_5(%arg0: i32, %arg1: i32) -> (i32, i32, i32) {
    %c0_i32 = arith.constant 0 : i32
    %c0_i32_0 = arith.constant 0 : i32
    return %arg0, %arg1, %c0_i32 : i32, i32, i32
  }
}

module attributes {stable_mosaic.version = 11 : i64} {
  func.func @_linear_attn_kernel(%arg0: i32, %arg1: i32, %arg2: memref<1x16x128xbf16, #tpu.memory_space<vmem>>, %arg3: memref<1x16x128xbf16, #tpu.memory_space<vmem>>, %arg4: memref<1x16x128xbf16, #tpu.memory_space<vmem>>, %arg5: memref<8x16xbf16, #tpu.memory_space<vmem>>, %arg6: memref<8x16xbf16, #tpu.memory_space<vmem>>, %arg7: memref<1x16x128xf32, #tpu.memory_space<vmem>>, %arg8: memref<8x128xbf16, #tpu.memory_space<vmem>>, %arg9: memref<8x128xbf16, #tpu.memory_space<vmem>>) attributes {dimension_semantics = [#tpu.dimension_semantics<parallel>, #tpu.dimension_semantics<arbitrary>], iteration_bounds = array<i64: 2, 1>, scalar_prefetch = 0 : i64, scratch_operands = 2 : i64, tpu.core_type = #tpu.core_type<tc>, window_params = [{transform_indices = @transform_0, window_bounds = array<i64: 1, 16, 128>}, {transform_indices = @transform_1, window_bounds = array<i64: 1, 16, 128>}, {transform_indices = @transform_2, window_bounds = array<i64: 1, 16, 128>}, {pipeline_mode = #tpu.pipeline_mode<synchronous>, transform_indices = @transform_3, window_bounds = array<i64: 8, 16>}, {pipeline_mode = #tpu.pipeline_mode<synchronous>, transform_indices = @transform_4, window_bounds = array<i64: 8, 16>}, {transform_indices = @transform_5, window_bounds = array<i64: 1, 16, 128>}]} {
    %c0_i32 = arith.constant 0 : i32
    %0 = arith.cmpi eq, %arg1, %c0_i32 : i32
    %1 = arith.extui %0 : i1 to i32
    %c0_i32_0 = arith.constant 0 : i32
    %2 = arith.cmpi ne, %1, %c0_i32_0 : i32
    scf.if %2 {
      %c0_43 = arith.constant 0 : index
      %c0_44 = arith.constant 0 : index
      %75 = vector.load %arg5[%c0_43, %c0_44] : memref<8x16xbf16, #tpu.memory_space<vmem>>, vector<8x16xbf16>
      %c0_45 = arith.constant 0 : index
      %c0_46 = arith.constant 0 : index
      %c0_47 = arith.constant 0 : index
      %76 = vector.load %arg3[%c0_45, %c0_46, %c0_47] : memref<1x16x128xbf16, #tpu.memory_space<vmem>>, vector<1x16x128xbf16>
      %77 = vector.shape_cast %76 : vector<1x16x128xbf16> to vector<16x128xbf16>
      %cst_48 = arith.constant dense<0.000000e+00> : vector<8x128xf32>
      %78 = tpu.matmul %75, %77, %cst_48 {dimension_numbers = #tpu.dot_dimension_numbers<[1], [0], [0], [1], [0, 0, 1, 1], [], []>} : vector<8x16xbf16>, vector<16x128xbf16>, vector<8x128xf32> -> vector<8x128xf32>
      %c0_49 = arith.constant 0 : index
      %c0_50 = arith.constant 0 : index
      %79 = vector.load %arg6[%c0_49, %c0_50] : memref<8x16xbf16, #tpu.memory_space<vmem>>, vector<8x16xbf16>
      %c0_51 = arith.constant 0 : index
      %c0_52 = arith.constant 0 : index
      %c0_53 = arith.constant 0 : index
      %80 = vector.load %arg4[%c0_51, %c0_52, %c0_53] : memref<1x16x128xbf16, #tpu.memory_space<vmem>>, vector<1x16x128xbf16>
      %81 = vector.shape_cast %80 : vector<1x16x128xbf16> to vector<16x128xbf16>
      %cst_54 = arith.constant dense<0.000000e+00> : vector<8x128xf32>
      %82 = tpu.matmul %79, %81, %cst_54 {dimension_numbers = #tpu.dot_dimension_numbers<[1], [0], [0], [1], [0, 0, 1, 1], [], []>} : vector<8x16xbf16>, vector<16x128xbf16>, vector<8x128xf32> -> vector<8x128xf32>
      %cst_55 = arith.constant 0.176776692 : f32
      %83 = vector.broadcast %cst_55 : f32 to vector<8x128xf32>
      %84 = arith.mulf %78, %83 : vector<8x128xf32>
      %85 = arith.truncf %84 : vector<8x128xf32> to vector<8x128xbf16>
      %c0_56 = arith.constant 0 : index
      %c0_57 = arith.constant 0 : index
      %86 = vector.load %arg8[%c0_56, %c0_57] : memref<8x128xbf16, #tpu.memory_space<vmem>>, vector<8x128xbf16>
      tpu.vector_store %arg8[%c0_56, %c0_57], %85 {strides = array<i32>} : memref<8x128xbf16, #tpu.memory_space<vmem>>, vector<8x128xbf16>,
      %87 = arith.truncf %82 : vector<8x128xf32> to vector<8x128xbf16>
      %c0_58 = arith.constant 0 : index
      %c0_59 = arith.constant 0 : index
      %88 = vector.load %arg9[%c0_58, %c0_59] : memref<8x128xbf16, #tpu.memory_space<vmem>>, vector<8x128xbf16>
      tpu.vector_store %arg9[%c0_58, %c0_59], %87 {strides = array<i32>} : memref<8x128xbf16, #tpu.memory_space<vmem>>, vector<8x128xbf16>,
    } else {
    }
    %c0 = arith.constant 0 : index
    %c0_1 = arith.constant 0 : index
    %c0_2 = arith.constant 0 : index
    %3 = vector.load %arg2[%c0, %c0_1, %c0_2] : memref<1x16x128xbf16, #tpu.memory_space<vmem>>, vector<1x16x32xbf16>
    %4 = vector.shape_cast %3 : vector<1x16x32xbf16> to vector<16x32xbf16>
    %c0_3 = arith.constant 0 : index
    %c0_4 = arith.constant 0 : index
    %5 = vector.load %arg8[%c0_3, %c0_4] : memref<8x128xbf16, #tpu.memory_space<vmem>>, vector<8x32xbf16>
    %c0_5 = arith.constant 0 : index
    %c0_6 = arith.constant 0 : index
    %6 = vector.load %arg9[%c0_5, %c0_6] : memref<8x128xbf16, #tpu.memory_space<vmem>>, vector<8x32xbf16>
    %cst = arith.constant dense<0.000000e+00> : vector<16x8xf32>
    %7 = tpu.matmul %4, %5, %cst {dimension_numbers = #tpu.dot_dimension_numbers<[1], [1], [0], [0], [0, 0, 1, 0], [], []>} : vector<16x32xbf16>, vector<8x32xbf16>, vector<16x8xf32> -> vector<16x8xf32>
    %cst_7 = arith.constant dense<0xFF800000> : vector<16xf32>
    %8 = vector.multi_reduction <maximumf>, %7, %cst_7 [1] : vector<16x8xf32> to vector<16xf32>
    %9 = vector.shape_cast %8 : vector<16xf32> to vector<16x1xf32>
    %10 = vector.broadcast %9 : vector<16x1xf32> to vector<16x8xf32>
    %11 = arith.subf %7, %10 : vector<16x8xf32>
    %12 = math.exp %11 : vector<16x8xf32>
    %cst_8 = arith.constant dense<0.000000e+00> : vector<16xf32>
    %13 = vector.multi_reduction <add>, %12, %cst_8 [1] : vector<16x8xf32> to vector<16xf32>
    %14 = vector.shape_cast %13 : vector<16xf32> to vector<16x1xf32>
    %15 = tpu.reciprocal %14 {approx = true} : vector<16x1xf32> -> vector<16x1xf32>
    %16 = vector.broadcast %15 : vector<16x1xf32> to vector<16x8xf32>
    %17 = arith.mulf %12, %16 : vector<16x8xf32>
    %18 = arith.truncf %17 : vector<16x8xf32> to vector<16x8xbf16>
    %cst_9 = arith.constant dense<0.000000e+00> : vector<16x32xf32>
    %19 = tpu.matmul %18, %6, %cst_9 {dimension_numbers = #tpu.dot_dimension_numbers<[1], [0], [0], [1], [0, 0, 1, 1], [], []>} : vector<16x8xbf16>, vector<8x32xbf16>, vector<16x32xf32> -> vector<16x32xf32>
    %c0_10 = arith.constant 0 : index
    %c0_11 = arith.constant 0 : index
    %c32 = arith.constant 32 : index
    %20 = vector.load %arg2[%c0_10, %c0_11, %c32] : memref<1x16x128xbf16, #tpu.memory_space<vmem>>, vector<1x16x32xbf16>
    %21 = vector.shape_cast %20 : vector<1x16x32xbf16> to vector<16x32xbf16>
    %c0_12 = arith.constant 0 : index
    %c32_13 = arith.constant 32 : index
    %22 = vector.load %arg8[%c0_12, %c32_13] : memref<8x128xbf16, #tpu.memory_space<vmem>>, vector<8x32xbf16>
    %c0_14 = arith.constant 0 : index
    %c32_15 = arith.constant 32 : index
    %23 = vector.load %arg9[%c0_14, %c32_15] : memref<8x128xbf16, #tpu.memory_space<vmem>>, vector<8x32xbf16>
    %cst_16 = arith.constant dense<0.000000e+00> : vector<16x8xf32>
    %24 = tpu.matmul %21, %22, %cst_16 {dimension_numbers = #tpu.dot_dimension_numbers<[1], [1], [0], [0], [0, 0, 1, 0], [], []>} : vector<16x32xbf16>, vector<8x32xbf16>, vector<16x8xf32> -> vector<16x8xf32>
    %cst_17 = arith.constant dense<0xFF800000> : vector<16xf32>
    %25 = vector.multi_reduction <maximumf>, %24, %cst_17 [1] : vector<16x8xf32> to vector<16xf32>
    %26 = vector.shape_cast %25 : vector<16xf32> to vector<16x1xf32>
    %27 = vector.broadcast %26 : vector<16x1xf32> to vector<16x8xf32>
    %28 = arith.subf %24, %27 : vector<16x8xf32>
    %29 = math.exp %28 : vector<16x8xf32>
    %cst_18 = arith.constant dense<0.000000e+00> : vector<16xf32>
    %30 = vector.multi_reduction <add>, %29, %cst_18 [1] : vector<16x8xf32> to vector<16xf32>
    %31 = vector.shape_cast %30 : vector<16xf32> to vector<16x1xf32>
    %32 = tpu.reciprocal %31 {approx = true} : vector<16x1xf32> -> vector<16x1xf32>
    %33 = vector.broadcast %32 : vector<16x1xf32> to vector<16x8xf32>
    %34 = arith.mulf %29, %33 : vector<16x8xf32>
    %35 = arith.truncf %34 : vector<16x8xf32> to vector<16x8xbf16>
    %cst_19 = arith.constant dense<0.000000e+00> : vector<16x32xf32>
    %36 = tpu.matmul %35, %23, %cst_19 {dimension_numbers = #tpu.dot_dimension_numbers<[1], [0], [0], [1], [0, 0, 1, 1], [], []>} : vector<16x8xbf16>, vector<8x32xbf16>, vector<16x32xf32> -> vector<16x32xf32>
    %c0_20 = arith.constant 0 : index
    %c0_21 = arith.constant 0 : index
    %c64 = arith.constant 64 : index
    %37 = vector.load %arg2[%c0_20, %c0_21, %c64] : memref<1x16x128xbf16, #tpu.memory_space<vmem>>, vector<1x16x32xbf16>
    %38 = vector.shape_cast %37 : vector<1x16x32xbf16> to vector<16x32xbf16>
    %c0_22 = arith.constant 0 : index
    %c64_23 = arith.constant 64 : index
    %39 = vector.load %arg8[%c0_22, %c64_23] : memref<8x128xbf16, #tpu.memory_space<vmem>>, vector<8x32xbf16>
    %c0_24 = arith.constant 0 : index
    %c64_25 = arith.constant 64 : index
    %40 = vector.load %arg9[%c0_24, %c64_25] : memref<8x128xbf16, #tpu.memory_space<vmem>>, vector<8x32xbf16>
    %cst_26 = arith.constant dense<0.000000e+00> : vector<16x8xf32>
    %41 = tpu.matmul %38, %39, %cst_26 {dimension_numbers = #tpu.dot_dimension_numbers<[1], [1], [0], [0], [0, 0, 1, 0], [], []>} : vector<16x32xbf16>, vector<8x32xbf16>, vector<16x8xf32> -> vector<16x8xf32>
    %cst_27 = arith.constant dense<0xFF800000> : vector<16xf32>
    %42 = vector.multi_reduction <maximumf>, %41, %cst_27 [1] : vector<16x8xf32> to vector<16xf32>
    %43 = vector.shape_cast %42 : vector<16xf32> to vector<16x1xf32>
    %44 = vector.broadcast %43 : vector<16x1xf32> to vector<16x8xf32>
    %45 = arith.subf %41, %44 : vector<16x8xf32>
    %46 = math.exp %45 : vector<16x8xf32>
    %cst_28 = arith.constant dense<0.000000e+00> : vector<16xf32>
    %47 = vector.multi_reduction <add>, %46, %cst_28 [1] : vector<16x8xf32> to vector<16xf32>
    %48 = vector.shape_cast %47 : vector<16xf32> to vector<16x1xf32>
    %49 = tpu.reciprocal %48 {approx = true} : vector<16x1xf32> -> vector<16x1xf32>
    %50 = vector.broadcast %49 : vector<16x1xf32> to vector<16x8xf32>
    %51 = arith.mulf %46, %50 : vector<16x8xf32>
    %52 = arith.truncf %51 : vector<16x8xf32> to vector<16x8xbf16>
    %cst_29 = arith.constant dense<0.000000e+00> : vector<16x32xf32>
    %53 = tpu.matmul %52, %40, %cst_29 {dimension_numbers = #tpu.dot_dimension_numbers<[1], [0], [0], [1], [0, 0, 1, 1], [], []>} : vector<16x8xbf16>, vector<8x32xbf16>, vector<16x32xf32> -> vector<16x32xf32>
    %c0_30 = arith.constant 0 : index
    %c0_31 = arith.constant 0 : index
    %c96 = arith.constant 96 : index
    %54 = vector.load %arg2[%c0_30, %c0_31, %c96] : memref<1x16x128xbf16, #tpu.memory_space<vmem>>, vector<1x16x32xbf16>
    %55 = vector.shape_cast %54 : vector<1x16x32xbf16> to vector<16x32xbf16>
    %c0_32 = arith.constant 0 : index
    %c96_33 = arith.constant 96 : index
    %56 = vector.load %arg8[%c0_32, %c96_33] : memref<8x128xbf16, #tpu.memory_space<vmem>>, vector<8x32xbf16>
    %c0_34 = arith.constant 0 : index
    %c96_35 = arith.constant 96 : index
    %57 = vector.load %arg9[%c0_34, %c96_35] : memref<8x128xbf16, #tpu.memory_space<vmem>>, vector<8x32xbf16>
    %cst_36 = arith.constant dense<0.000000e+00> : vector<16x8xf32>
    %58 = tpu.matmul %55, %56, %cst_36 {dimension_numbers = #tpu.dot_dimension_numbers<[1], [1], [0], [0], [0, 0, 1, 0], [], []>} : vector<16x32xbf16>, vector<8x32xbf16>, vector<16x8xf32> -> vector<16x8xf32>
    %cst_37 = arith.constant dense<0xFF800000> : vector<16xf32>
    %59 = vector.multi_reduction <maximumf>, %58, %cst_37 [1] : vector<16x8xf32> to vector<16xf32>
    %60 = vector.shape_cast %59 : vector<16xf32> to vector<16x1xf32>
    %61 = vector.broadcast %60 : vector<16x1xf32> to vector<16x8xf32>
    %62 = arith.subf %58, %61 : vector<16x8xf32>
    %63 = math.exp %62 : vector<16x8xf32>
    %cst_38 = arith.constant dense<0.000000e+00> : vector<16xf32>
    %64 = vector.multi_reduction <add>, %63, %cst_38 [1] : vector<16x8xf32> to vector<16xf32>
    %65 = vector.shape_cast %64 : vector<16xf32> to vector<16x1xf32>
    %66 = tpu.reciprocal %65 {approx = true} : vector<16x1xf32> -> vector<16x1xf32>
    %67 = vector.broadcast %66 : vector<16x1xf32> to vector<16x8xf32>
    %68 = arith.mulf %63, %67 : vector<16x8xf32>
    %69 = arith.truncf %68 : vector<16x8xf32> to vector<16x8xbf16>
    %cst_39 = arith.constant dense<0.000000e+00> : vector<16x32xf32>
    %70 = tpu.matmul %69, %57, %cst_39 {dimension_numbers = #tpu.dot_dimension_numbers<[1], [0], [0], [1], [0, 0, 1, 1], [], []>} : vector<16x8xbf16>, vector<8x32xbf16>, vector<16x32xf32> -> vector<16x32xf32>
    %71 = tpu.concatenate %19, %36, %53, %70 in 1 : vector<16x32xf32>, vector<16x32xf32>, vector<16x32xf32>, vector<16x32xf32> -> vector<16x128xf32>
    %c0_40 = arith.constant 0 : index
    %c0_41 = arith.constant 0 : index
    %c0_42 = arith.constant 0 : index
    %72 = vector.load %arg7[%c0_40, %c0_41, %c0_42] : memref<1x16x128xf32, #tpu.memory_space<vmem>>, vector<1x16x128xf32>
    %73 = vector.shape_cast %72 : vector<1x16x128xf32> to vector<16x128xf32>
    %74 = vector.shape_cast %71 : vector<16x128xf32> to vector<1x16x128xf32>
    tpu.vector_store %arg7[%c0_40, %c0_41, %c0_42], %74 {strides = array<i32>} : memref<1x16x128xf32, #tpu.memory_space<vmem>>, vector<1x16x128xf32>,
    return
  }
  func.func @transform_0(%arg0: i32, %arg1: i32) -> (i32, i32, i32) {
    %c0_i32 = arith.constant 0 : i32
    %c0_i32_0 = arith.constant 0 : i32
    return %arg0, %arg1, %c0_i32 : i32, i32, i32
  }
  func.func @transform_1(%arg0: i32, %arg1: i32) -> (i32, i32, i32) {
    %c0_i32 = arith.constant 0 : i32
    %c0_i32_0 = arith.constant 0 : i32
    %c0_i32_1 = arith.constant 0 : i32
    return %arg0, %c0_i32, %c0_i32_0 : i32, i32, i32
  }
  func.func @transform_2(%arg0: i32, %arg1: i32) -> (i32, i32, i32) {
    %c0_i32 = arith.constant 0 : i32
    %c0_i32_0 = arith.constant 0 : i32
    %c0_i32_1 = arith.constant 0 : i32
    return %arg0, %c0_i32, %c0_i32_0 : i32, i32, i32
  }
  func.func @transform_3(%arg0: i32, %arg1: i32) -> (i32, i32) {
    %c0_i32 = arith.constant 0 : i32
    %c0_i32_0 = arith.constant 0 : i32
    %c0_i32_1 = arith.constant 0 : i32
    return %c0_i32, %c0_i32_0 : i32, i32
  }
  func.func @transform_4(%arg0: i32, %arg1: i32) -> (i32, i32) {
    %c0_i32 = arith.constant 0 : i32
    %c0_i32_0 = arith.constant 0 : i32
    %c0_i32_1 = arith.constant 0 : i32
    return %c0_i32, %c0_i32_0 : i32, i32
  }
  func.func @transform_5(%arg0: i32, %arg1: i32) -> (i32, i32, i32) {
    %c0_i32 = arith.constant 0 : i32
    %c0_i32_0 = arith.constant 0 : i32
    return %arg0, %arg1, %c0_i32 : i32, i32, i32
  }
}

</mosaic_0001>

<llo_original>
// kernel: tpu_custom_call.1
$region0: #{tpu_custom_call.1}
  #allocation0 [shape = 'u32[]', space=smem, size = 0x4, offset = 0x4, fixed_abs, tag = 'smem constant byte address 0x4 - core index']
  #allocation1 [shape = 'u32[144,128]{1,0:T(1,128)}', space=vmem, size = 0x12000, scoped, tag = 'internal scratch']
  #allocation2 [shape = 'bf16[8,128]{1,0:T(8,128)(2,1)}', space=vmem, size = 0x800, scoped, tag = 'scratch operand']
  #allocation3 [shape = 'bf16[8,128]{1,0:T(8,128)(2,1)}', space=vmem, size = 0x800, scoped, tag = 'scratch operand']
  %s0 = inlined_call_operand.hbm [shape: bf16[2,16,128], index: 0, kind: input, shape index: {}]
  %s1 = inlined_call_operand.hbm [shape: bf16[2,16,128], index: 1, kind: input, shape index: {}]
  %s2 = inlined_call_operand.hbm [shape: bf16[2,16,128], index: 2, kind: input, shape index: {}]
  %s3 = inlined_call_operand.vmem [shape: bf16[8,16], index: 3, kind: input, shape index: {}]
  %s4 = inlined_call_operand.hbm [shape: bf16[8,16], index: 4, kind: input, shape index: {}]
  %s5 = inlined_call_operand.hbm [shape: f32[2,16,128], index: 5, kind: output, shape index: {}]
  %s6 = sld [smem:[#allocation0]]
  $region73: #{tpu_custom_call.1} parent=0
    _
  %s8 = ssub.s32 1, %s6
  %s9 = scalar_select 0, %s8, %s6
  $region1: #{tpu_custom_call.1} parent=0
    #allocation4 [shape = 'u8[8192]{0}', space=vmem, size = 0x2000, scoped, tag = 'input window, operand 0']
    #allocation5 [shape = 's32[2]{0}', space=sflag, size = 0x8, scoped, tag = 'scoped memory for tpu_custom_call.1']
    #allocation6 [shape = 's32[2]{0}', space=sflag, size = 0x8, scoped, tag = 'scoped memory for tpu_custom_call.1']
    #allocation7 [shape = 'u8[8192]{0}', space=vmem, size = 0x2000, scoped, tag = 'input window, operand 1']
    #allocation8 [shape = 's32[2]{0}', space=sflag, size = 0x8, scoped, tag = 'scoped memory for tpu_custom_call.1']
    #allocation9 [shape = 'u8[8192]{0}', space=vmem, size = 0x2000, scoped, tag = 'input window, operand 2']
    #allocation10 [shape = 'u8[2048]{0}', space=vmem, size = 0x800, scoped, tag = 'input window, operand 4, single buffered']
    #allocation11 [shape = 's32[1]{0}', space=sflag, size = 0x4, scoped, tag = 'scoped memory for tpu_custom_call.1']
    #allocation12 [shape = 'u8[16384]{0}', space=vmem, size = 0x4000, scoped, tag = 'output window, operand 0']
    %10 = vsyncpa [#allocation5], 0
    %s11 = scalar_lea.sflag [#allocation5], 1
    %12 = vsyncpa %s11, 0
    %13 = vsyncpa [#allocation8], 0
    %s14 = scalar_lea.sflag [#allocation8], 1
    %15 = vsyncpa %s14, 0
    %16 = vsyncpa [#allocation11], 0
    %17 = vsyncpa [#allocation6], 0
    %s18 = scalar_lea.sflag [#allocation6], 1
    %19 = vsyncpa %s18, 0
    loop: start=0, step=1, limit=4
    $region2: #{tpu_custom_call.1} parent=1 // loop_pre_header
      _
    $region3: #{tpu_custom_call.1} parent=1 // loop_header
      %s21 = sphi 0, %s25
      %p22 = scmp.ge.s32.totalorder %s21, 4
      %s28 = sphi 0, %s40
      %s29 = sphi 0, %s36
      %s30 = sphi 0, %s28
      %s31 = sphi 0, %s29
      %s32 = sphi 0, %s30
      %s33 = sphi 0, %s31
      %s45 = sphi 0, %s47
      %s48 = sphi 0, %s45
      %s49 = sphi 0, %s48
      %s65 = sphi 0, %s49
      %s71 = sphi 0, %s73
      %s74 = sphi 0, %s71
      %s75 = sphi 0, %s74
      %s91 = sphi 0, %s75
      %s97 = sphi 0, %s99
      %s100 = sphi 0, %s97
      %s101 = sphi 0, %s100
      %s117 = sphi 0, %s101
      %s121 = sphi 0, %s121
      %s123 = sphi 0, %s121
      %s124 = sphi 0, %s123
      %s138 = sphi 0, %s124
      %s142 = sphi 0, %s142
      %s144 = sphi 0, %s142
      %s145 = sphi 0, %s144
      %s159 = sphi 0, %s145
      %s167 = sphi 0, %s169
      %s170 = sphi 0, %s167
      %s171 = sphi 0, %s170
      %s187 = sphi 0, %s171
    $region4: #{tpu_custom_call.1} parent=1 // loop_header_branch
      %24 = sbr.rel (%p22) target = $region8
    $region5: #{tpu_custom_call.1} parent=1 // loop_body
      %s26 = ssub.s32 %s21, 1
      %s27 = ssub.s32 %s21, 2
      %s34 = sadd.s32 1, %s29
      %p35 = scmp.ge.s32.totalorder %s34, 1
      %s36 = scalar_select %p35, 0, %s34
      %s37 = sadd.s32 1, %s28
      %s38 = scalar_select %p35, %s37, %s28
      %p39 = scmp.ge.s32.totalorder %s38, 2
      %s40 = scalar_select %p39, 0, %s38
      %s41 = ssub.s32 %s28, %s40
      %s42 = ssub.s32 %s29, %s36
      %s43 = sor.u32 %s41, %s42
      %p44 = scmp.eq.s32.totalorder %s43, 0
      %s46 = sadd.s32 %s45, 1
      %s47 = scalar_select %p44, %s45, %s46
      %p50 = pneg %p44
      %p51 = scmp.eq.s32.totalorder %s21, 1
      %p52 = por %p50, %p51
      %p53 = scmp.ne.s32.totalorder %s45, %s48
      %p54 = scmp.eq.s32.totalorder %s21, 0
      %p55 = por %p53, %p54
      %p56 = scmp.ne.s32.totalorder %s45, %s48
      %p57 = scmp.eq.s32.totalorder %s26, 1
      %p58 = por %p56, %p57
      %p59 = scmp.ne.s32.totalorder %s48, %s49
      %p60 = scmp.eq.s32.totalorder %s26, 0
      %p61 = por %p59, %p60
      %p62 = scmp.ne.s32.totalorder %s48, %s49
      %p63 = scmp.eq.s32.totalorder %s27, 1
      %p64 = por %p62, %p63
      %p66 = scmp.ne.s32.totalorder %s49, %s65
      %p67 = scmp.eq.s32.totalorder %s27, 0
      %p68 = por %p66, %p67
      %s69 = ssub.s32 %s28, %s40
      %p70 = scmp.eq.s32.totalorder %s69, 0
      %s72 = sadd.s32 %s71, 1
      %s73 = scalar_select %p70, %s71, %s72
      %p76 = pneg %p70
      %p77 = scmp.eq.s32.totalorder %s21, 1
      %p78 = por %p76, %p77
      %p79 = scmp.ne.s32.totalorder %s71, %s74
      %p80 = scmp.eq.s32.totalorder %s21, 0
      %p81 = por %p79, %p80
      %p82 = scmp.ne.s32.totalorder %s71, %s74
      %p83 = scmp.eq.s32.totalorder %s26, 1
      %p84 = por %p82, %p83
      %p85 = scmp.ne.s32.totalorder %s74, %s75
      %p86 = scmp.eq.s32.totalorder %s26, 0
      %p87 = por %p85, %p86
      %p88 = scmp.ne.s32.totalorder %s74, %s75
      %p89 = scmp.eq.s32.totalorder %s27, 1
      %p90 = por %p88, %p89
      %p92 = scmp.ne.s32.totalorder %s75, %s91
      %p93 = scmp.eq.s32.totalorder %s27, 0
      %p94 = por %p92, %p93
      %s95 = ssub.s32 %s28, %s40
      %p96 = scmp.eq.s32.totalorder %s95, 0
      %s98 = sadd.s32 %s97, 1
      %s99 = scalar_select %p96, %s97, %s98
      %p102 = pneg %p96
      %p103 = scmp.eq.s32.totalorder %s21, 1
      %p104 = por %p102, %p103
      %p105 = scmp.ne.s32.totalorder %s97, %s100
      %p106 = scmp.eq.s32.totalorder %s21, 0
      %p107 = por %p105, %p106
      %p108 = scmp.ne.s32.totalorder %s97, %s100
      %p109 = scmp.eq.s32.totalorder %s26, 1
      %p110 = por %p108, %p109
      %p111 = scmp.ne.s32.totalorder %s100, %s101
      %p112 = scmp.eq.s32.totalorder %s26, 0
      %p113 = por %p111, %p112
      %p114 = scmp.ne.s32.totalorder %s100, %s101
      %p115 = scmp.eq.s32.totalorder %s27, 1
      %p116 = por %p114, %p115
      %p118 = scmp.ne.s32.totalorder %s101, %s117
      %p119 = scmp.eq.s32.totalorder %s27, 0
      %p120 = por %p118, %p119
      %s122 = sadd.s32 %s121, 1
      %p125 = scmp.eq.s32.totalorder %s21, 1
      %p126 = scmp.ne.s32.totalorder %s121, %s123
      %p127 = scmp.eq.s32.totalorder %s21, 0
      %p128 = por %p126, %p127
      %p129 = scmp.ne.s32.totalorder %s121, %s123
      %p130 = scmp.eq.s32.totalorder %s26, 1
      %p131 = por %p129, %p130
      %p132 = scmp.ne.s32.totalorder %s123, %s124
      %p133 = scmp.eq.s32.totalorder %s26, 0
      %p134 = por %p132, %p133
      %p135 = scmp.ne.s32.totalorder %s123, %s124
      %p136 = scmp.eq.s32.totalorder %s27, 1
      %p137 = por %p135, %p136
      %p139 = scmp.ne.s32.totalorder %s124, %s138
      %p140 = scmp.eq.s32.totalorder %s27, 0
      %p141 = por %p139, %p140
      %s143 = sadd.s32 %s142, 1
      %p146 = scmp.eq.s32.totalorder %s21, 1
      %p147 = scmp.ne.s32.totalorder %s142, %s144
      %p148 = scmp.eq.s32.totalorder %s21, 0
      %p149 = por %p147, %p148
      %p150 = scmp.ne.s32.totalorder %s142, %s144
      %p151 = scmp.eq.s32.totalorder %s26, 1
      %p152 = por %p150, %p151
      %p153 = scmp.ne.s32.totalorder %s144, %s145
      %p154 = scmp.eq.s32.totalorder %s26, 0
      %p155 = por %p153, %p154
      %p156 = scmp.ne.s32.totalorder %s144, %s145
      %p157 = scmp.eq.s32.totalorder %s27, 1
      %p158 = por %p156, %p157
      %p160 = scmp.ne.s32.totalorder %s145, %s159
      %p161 = scmp.eq.s32.totalorder %s27, 0
      %p162 = por %p160, %p161
      %s163 = ssub.s32 %s28, %s40
      %s164 = ssub.s32 %s29, %s36
      %s165 = sor.u32 %s163, %s164
      %p166 = scmp.eq.s32.totalorder %s165, 0
      %s168 = sadd.s32 %s167, 1
      %s169 = scalar_select %p166, %s167, %s168
      %p172 = pneg %p166
      %p173 = scmp.eq.s32.totalorder %s21, 1
      %p174 = por %p172, %p173
      %p175 = scmp.ne.s32.totalorder %s167, %s170
      %p176 = scmp.eq.s32.totalorder %s21, 0
      %p177 = por %p175, %p176
      %p178 = scmp.ne.s32.totalorder %s167, %s170
      %p179 = scmp.eq.s32.totalorder %s26, 1
      %p180 = por %p178, %p179
      %p181 = scmp.ne.s32.totalorder %s170, %s171
      %p182 = scmp.eq.s32.totalorder %s26, 0
      %p183 = por %p181, %p182
      %p184 = scmp.ne.s32.totalorder %s170, %s171
      %p185 = scmp.eq.s32.totalorder %s27, 1
      %p186 = por %p184, %p185
      %p188 = scmp.ne.s32.totalorder %s171, %s187
      %p189 = scmp.eq.s32.totalorder %s27, 0
      %p190 = por %p188, %p189
      %p191 = scmp.le.s32.totalorder 1, %s21
      %p192 = scmp.lt.s32.totalorder %s21, 3
      %p193 = pnand %p191, %p192
      %p194 = pneg %p193
      // Predicated region
      $region9: #{tpu_custom_call.1} parent=5 // pred_check
        _
      $region10: #{tpu_custom_call.1} parent=5 // pred_check_branch
        %196 = sbr.rel (%p193) target = $region12
      $region11: #{tpu_custom_call.1} parent=5 // pred_region
        %s197 = ssub.s32 %s21, 1
        // Predicated region
        $region13: #{tpu_custom_call.1} parent=11 // pred_check
          %p198 = pneg %p134
        $region14: #{tpu_custom_call.1} parent=11 // pred_check_branch
          %200 = sbr.rel (%p198) target = $region16
        $region15: #{tpu_custom_call.1} parent=11 // pred_region
          _
        $region16: #{tpu_custom_call.1} parent=11 // pred_fallthru
          _
        // Predicated region
        $region17: #{tpu_custom_call.1} parent=11 // pred_check
          %p201 = pneg %p155
        $region18: #{tpu_custom_call.1} parent=11 // pred_check_branch
          %203 = sbr.rel (%p201) target = $region20
        $region19: #{tpu_custom_call.1} parent=11 // pred_region
          %s205 = ssub.s32 64, 64
          %206 = vsyncadd [#allocation11], %s205
          %s208 = sshll.u32 [#allocation10], 4
          %s209 = int_to_ptr.vmem [resolvable:$true] %s208
          %211 = dma.hbm_to_vmem [thread:$0]  %s4, 64, %s209, [#allocation11]
        $region20: #{tpu_custom_call.1} parent=11 // pred_fallthru
          _
      $region12: #{tpu_custom_call.1} parent=5 // pred_fallthru
        _
      %p212 = scmp.lt.s32.totalorder %s21, 2
      // Predicated region
      $region21: #{tpu_custom_call.1} parent=5 // pred_check
        %p213 = pneg %p212
      $region22: #{tpu_custom_call.1} parent=5 // pred_check_branch
        %215 = sbr.rel (%p213) target = $region24
      $region23: #{tpu_custom_call.1} parent=5 // pred_region
        // Predicated region
        $region25: #{tpu_custom_call.1} parent=23 // pred_check
          %p216 = pneg %p55
        $region26: #{tpu_custom_call.1} parent=23 // pred_check_branch
          %218 = sbr.rel (%p216) target = $region28
        $region27: #{tpu_custom_call.1} parent=23 // pred_region
          %s219 = sand.u32 %s45, 1
          %s220 = scalar_lea.sflag [#allocation5], %s219
          %s221 = sand.u32 %s45, 1
          %s222 = smul.addr %s221, 8
          %s223 = scalar_lea.vmem [#allocation4], %s222
          %s224 = smul.u32 2, %s29
          %s226 = ssub.s32 128, 128
          %227 = vsyncadd %s220, %s226
          %s228 = smul.addr %s28, 2
          %s229 = sadd.s32 %s224, %s228
          %s230 = smul.addr %s229, 64
          %s231 = scalar_lea.hbm %s0, %s230
          %s232 = sshll.u32 %s223, 4
          %s233 = int_to_ptr.vmem [resolvable:$true] %s232
          %238 = dma.hbm_to_vmem [thread:$0]  %s231, 128, %s233, %s220, 64, 64, 4
        $region28: #{tpu_custom_call.1} parent=23 // pred_fallthru
          _
        // Predicated region
        $region29: #{tpu_custom_call.1} parent=23 // pred_check
          %p239 = pneg %p81
        $region30: #{tpu_custom_call.1} parent=23 // pred_check_branch
          %241 = sbr.rel (%p239) target = $region32
        $region31: #{tpu_custom_call.1} parent=23 // pred_region
          %s242 = sand.u32 %s21, 1
          %s243 = scalar_lea.sflag [#allocation8], %s242
          %s244 = sand.u32 %s71, 1
          %s245 = smul.addr %s244, 8
          %s246 = scalar_lea.vmem [#allocation7], %s245
          %s248 = ssub.s32 128, 128
          %249 = vsyncadd %s243, %s248
          %s250 = smul.addr %s28, 2
          %s251 = smul.addr %s250, 64
          %s252 = scalar_lea.hbm %s1, %s251
          %s253 = sshll.u32 %s246, 4
          %s254 = int_to_ptr.vmem [resolvable:$true] %s253
          %259 = dma.hbm_to_vmem [thread:$0]  %s252, 128, %s254, %s243, 64, 64, 4
        $region32: #{tpu_custom_call.1} parent=23 // pred_fallthru
          _
        // Predicated region
        $region33: #{tpu_custom_call.1} parent=23 // pred_check
          %p260 = pneg %p107
        $region34: #{tpu_custom_call.1} parent=23 // pred_check_branch
          %262 = sbr.rel (%p260) target = $region36
        $region35: #{tpu_custom_call.1} parent=23 // pred_region
          %s263 = sand.u32 %s21, 1
          %s264 = scalar_lea.sflag [#allocation8], %s263
          %s265 = sand.u32 %s97, 1
          %s266 = smul.addr %s265, 8
          %s267 = scalar_lea.vmem [#allocation9], %s266
          %s269 = ssub.s32 128, 128
          %270 = vsyncadd %s264, %s269
          %s271 = smul.addr %s28, 2
          %s272 = smul.addr %s271, 64
          %s273 = scalar_lea.hbm %s2, %s272
          %s274 = sshll.u32 %s267, 4
          %s275 = int_to_ptr.vmem [resolvable:$true] %s274
          %280 = dma.hbm_to_vmem [thread:$0]  %s273, 128, %s275, %s264, 64, 64, 4
        $region36: #{tpu_custom_call.1} parent=23 // pred_fallthru
          _
      $region24: #{tpu_custom_call.1} parent=5 // pred_fallthru
        _
      %p281 = scmp.le.s32.totalorder 1, %s21
      %p282 = scmp.lt.s32.totalorder %s21, 3
      %p283 = pnand %p281, %p282
      %p284 = pneg %p283
      // Predicated region
      $region37: #{tpu_custom_call.1} parent=5 // pred_check
        _
      $region38: #{tpu_custom_call.1} parent=5 // pred_check_branch
        %286 = sbr.rel (%p283) target = $region40
      $region39: #{tpu_custom_call.1} parent=5 // pred_region
        %s287 = ssub.s32 %s21, 1
        %s288 = sand.u32 %s48, 1
        %s289 = scalar_lea.sflag [#allocation5], %s288
        %s290 = sand.u32 %s48, 1
        %s291 = smul.addr %s290, 8
        %s292 = scalar_lea.vmem [#allocation4], %s291
        // Predicated region
        $region41: #{tpu_custom_call.1} parent=39 // pred_check
          %p293 = pneg %p61
        $region42: #{tpu_custom_call.1} parent=39 // pred_check_branch
          %295 = sbr.rel (%p293) target = $region44
        $region43: #{tpu_custom_call.1} parent=39 // pred_region
          %296 = dma.done %s289, 128
        $region44: #{tpu_custom_call.1} parent=39 // pred_fallthru
          _
        %s297 = sand.u32 %s26, 1
        %s298 = scalar_lea.sflag [#allocation8], %s297
        %s299 = sand.u32 %s74, 1
        %s300 = smul.addr %s299, 8
        %s301 = scalar_lea.vmem [#allocation7], %s300
        // Predicated region
        $region45: #{tpu_custom_call.1} parent=39 // pred_check
          %p302 = pneg %p87
        $region46: #{tpu_custom_call.1} parent=39 // pred_check_branch
          %304 = sbr.rel (%p302) target = $region48
        $region47: #{tpu_custom_call.1} parent=39 // pred_region
          %305 = dma.done %s298, 128
        $region48: #{tpu_custom_call.1} parent=39 // pred_fallthru
          _
        %s306 = sand.u32 %s26, 1
        %s307 = scalar_lea.sflag [#allocation8], %s306
        %s308 = sand.u32 %s100, 1
        %s309 = smul.addr %s308, 8
        %s310 = scalar_lea.vmem [#allocation9], %s309
        // Predicated region
        $region49: #{tpu_custom_call.1} parent=39 // pred_check
          %p311 = pneg %p113
        $region50: #{tpu_custom_call.1} parent=39 // pred_check_branch
          %313 = sbr.rel (%p311) target = $region52
        $region51: #{tpu_custom_call.1} parent=39 // pred_region
          %314 = dma.done %s307, 128
        $region52: #{tpu_custom_call.1} parent=39 // pred_fallthru
          _
        // Predicated region
        $region53: #{tpu_custom_call.1} parent=39 // pred_check
          %p315 = pneg %p155
        $region54: #{tpu_custom_call.1} parent=39 // pred_check_branch
          %317 = sbr.rel (%p315) target = $region56
        $region55: #{tpu_custom_call.1} parent=39 // pred_region
          %318 = dma.done [#allocation11], 64
        $region56: #{tpu_custom_call.1} parent=39 // pred_fallthru
          _
        %s319 = sand.u32 %s48, 1
        %s320 = scalar_lea.sflag [#allocation5], %s319
        %s321 = sand.u32 %s48, 1
        %s322 = smul.addr %s321, 8
        %s323 = scalar_lea.vmem [#allocation4], %s322
        %p324 = pneg %p61
        %p325 = pneg %p58
        %s326 = sand.u32 %s26, 1
        %s327 = scalar_lea.sflag [#allocation8], %s326
        %s328 = sand.u32 %s74, 1
        %s329 = smul.addr %s328, 8
        %s330 = scalar_lea.vmem [#allocation7], %s329
        %p331 = pneg %p87
        %p332 = pneg %p84
        %s333 = sand.u32 %s26, 1
        %s334 = scalar_lea.sflag [#allocation8], %s333
        %s335 = sand.u32 %s100, 1
        %s336 = smul.addr %s335, 8
        %s337 = scalar_lea.vmem [#allocation9], %s336
        %p338 = pneg %p113
        %p339 = pneg %p110
        %p340 = pneg %p134
        %p341 = pneg %p131
        %p342 = pneg %p155
        %p343 = pneg %p152
        %p344 = pneg %p183
        %p345 = pneg %p180
        %s346 = sand.u32 %s170, 1
        %s347 = scalar_lea.sflag [#allocation6], %s346
        %s348 = sand.u32 %s170, 1
        %s349 = smul.addr %s348, 16
        %s350 = scalar_lea.vmem [#allocation12], %s349
        %s351 = smul.u32 2, %s31
        %s352 = smul.u32 2, %s31
        %p354 = scmp.eq.s32.totalorder %s31, 0
        // Predicated region
        $region57: #{tpu_custom_call.1} parent=39 // pred_check
          %p355 = pneg %p354
        $region58: #{tpu_custom_call.1} parent=39 // pred_check_branch
          %357 = sbr.rel (%p355) target = $region60
        $region59: #{tpu_custom_call.1} parent=39 // pred_region
          %v358 = vld [vmem:[%s3] sm:$0xf]
          %v359 = vld [vmem:[%s301] sm:$0xf]
          %v360 = vld [vmem:[%s301 + $0x4] sm:$0xf]
          %v363 = vunpack.c.l.b16 %v359
          %v364 = vunpack.c.l.b16 %v360
          %v365 = vpack.c.b16 %v364, %v363
          %vm367 = vcmask 130048
          %v369 = vsel %vm367, %v358, 0
          %371 = vmatprep.subr.bf16.mxu0 0
          %372 = vmatpush1.bf16.msra.mxu0 0
          %373 = vmatprep.subr.bf16.mxu0 0
          %374 = vmatpush1.bf16.msra.mxu0 0
          %375 = vmatprep.subr.bf16.mxu0 0
          %376 = vmatpush1.bf16.msra.mxu0 0
          %377 = vmatprep.subr.bf16.mxu0 0
          %378 = vmatpush1.bf16.msra.mxu0 0
          %379 = vmatprep.subr.bf16.mxu0 0
          %380 = vmatpush1.bf16.msra.mxu0 0
          %381 = vmatprep.subr.bf16.mxu0 0
          %382 = vmatpush1.bf16.msra.mxu0 0
          %383 = vmatprep.subr.bf16.mxu0 0
          %384 = vmatpush1.bf16.msra.mxu0 0
          %385 = vmatprep.subr.bf16.mxu0 0
          %386 = vmatpush1.bf16.msra.mxu0 %v365
          %387 = vmatprep.subr.bf16.mxu0 0
          %388 = vmatpush2.bf16.msra.mxu0 0
          %389 = vmatprep.subr.bf16.mxu0 0
          %390 = vmatpush2.bf16.msra.mxu0 0
          %391 = vmatprep.subr.bf16.mxu0 0
          %392 = vmatpush2.bf16.msra.mxu0 0
          %393 = vmatprep.subr.bf16.mxu0 0
          %394 = vmatpush2.bf16.msra.mxu0 0
          %395 = vmatprep.subr.bf16.mxu0 0
          %396 = vmatpush2.bf16.msra.mxu0 0
          %397 = vmatprep.subr.bf16.mxu0 0
          %398 = vmatpush2.bf16.msra.mxu0 0
          %399 = vmatprep.subr.bf16.mxu0 0
          %400 = vmatpush2.bf16.msra.mxu0 0
          %401 = vmatprep.subr.bf16.mxu0 0
          %402 = vmatpush2.bf16.msra.mxu0 0
          %403 = vmatprep.mubr.bf16.mxu0 0
          %404 = vmatmul.mubr.bf16.gmra.mxu0 %v369
          %v405 = vpop.f32.mrf.mxu0
          %v406 = vadd.f32 0.0, %v405
          %v407 = vpop.f32.mrf.mxu0
          %v408 = vpop.f32.mrf.mxu0
          %v409 = vpop.f32.mrf.mxu0
          %410 = vdwg.mxu0
          %v411 = vld [vmem:[#allocation10] sm:$0xf]
          %v412 = vld [vmem:[%s310] sm:$0xf]
          %v413 = vld [vmem:[%s310 + $0x4] sm:$0xf]
          %v416 = vunpack.c.l.b16 %v412
          %v417 = vunpack.c.l.b16 %v413
          %v418 = vpack.c.b16 %v417, %v416
          %v421 = vsel %vm367, %v411, 0
          %423 = vmatprep.subr.bf16.mxu0 0
          %424 = vmatpush1.bf16.msra.mxu0 0
          %425 = vmatprep.subr.bf16.mxu0 0
          %426 = vmatpush1.bf16.msra.mxu0 0
          %427 = vmatprep.subr.bf16.mxu0 0
          %428 = vmatpush1.bf16.msra.mxu0 0
          %429 = vmatprep.subr.bf16.mxu0 0
          %430 = vmatpush1.bf16.msra.mxu0 0
          %431 = vmatprep.subr.bf16.mxu0 0
          %432 = vmatpush1.bf16.msra.mxu0 0
          %433 = vmatprep.subr.bf16.mxu0 0
          %434 = vmatpush1.bf16.msra.mxu0 0
          %435 = vmatprep.subr.bf16.mxu0 0
          %436 = vmatpush1.bf16.msra.mxu0 0
          %437 = vmatprep.subr.bf16.mxu0 0
          %438 = vmatpush1.bf16.msra.mxu0 %v418
          %439 = vmatprep.subr.bf16.mxu0 0
          %440 = vmatpush2.bf16.msra.mxu0 0
          %441 = vmatprep.subr.bf16.mxu0 0
          %442 = vmatpush2.bf16.msra.mxu0 0
          %443 = vmatprep.subr.bf16.mxu0 0
          %444 = vmatpush2.bf16.msra.mxu0 0
          %445 = vmatprep.subr.bf16.mxu0 0
          %446 = vmatpush2.bf16.msra.mxu0 0
          %447 = vmatprep.subr.bf16.mxu0 0
          %448 = vmatpush2.bf16.msra.mxu0 0
          %449 = vmatprep.subr.bf16.mxu0 0
          %450 = vmatpush2.bf16.msra.mxu0 0
          %451 = vmatprep.subr.bf16.mxu0 0
          %452 = vmatpush2.bf16.msra.mxu0 0
          %453 = vmatprep.subr.bf16.mxu0 0
          %454 = vmatpush2.bf16.msra.mxu0 0
          %455 = vmatprep.mubr.bf16.mxu0 0
          %456 = vmatmul.mubr.bf16.gmra.mxu0 %v421
          %v457 = vpop.f32.mrf.mxu0
          %v458 = vadd.f32 0.0, %v457
          %v459 = vpop.f32.mrf.mxu0
          %v460 = vpop.f32.mrf.mxu0
          %v461 = vpop.f32.mrf.mxu0
          %462 = vdwg.mxu0
          %v463 = vmul.f32 %v406, 0.17677669
          %v464 = vpack.c.bf16 %v463, %v463
          %465 = vst [vmem:[#allocation2] sm:$0xf] %v464
          %v466 = vpack.c.bf16 %v458, %v458
          %467 = vst [vmem:[#allocation3] sm:$0xf] %v466
        $region60: #{tpu_custom_call.1} parent=39 // pred_fallthru
          _
        %v468 = vld [vmem:[%s292] sm:$0xf]
        %v469 = vld [vmem:[%s292 + $0x4] sm:$0xf]
        %v470 = vld [vmem:[#allocation2] sm:$0xf]
        %v471 = vld [vmem:[#allocation3] sm:$0xf]
        %v474 = vunpack.c.l.b16 %v468
        %v475 = vunpack.c.l.b16 %v469
        %v476 = vpack.c.b16 %v475, %v474
        %vm477 = vcmask 261120
        %v479 = vsel %vm477, %v476, 0
        %v482 = vsel %vm477, %v470, 0
        %484 = vmatprep.subr.bf16.mxu0 0
        %485 = vmatpush1.bf16.xpose.msra.mxu0 0
        %486 = vmatprep.subr.bf16.mxu0 0
        %487 = vmatpush1.bf16.xpose.msra.mxu0 0
        %488 = vmatprep.subr.bf16.mxu0 0
        %489 = vmatpush1.bf16.xpose.msra.mxu0 0
        %490 = vmatprep.subr.bf16.mxu0 0
        %491 = vmatpush1.bf16.xpose.msra.mxu0 0
        %492 = vmatprep.subr.bf16.mxu0 0
        %493 = vmatpush1.bf16.xpose.msra.mxu0 0
        %494 = vmatprep.subr.bf16.mxu0 0
        %495 = vmatpush1.bf16.xpose.msra.mxu0 0
        %496 = vmatprep.subr.bf16.mxu0 0
        %497 = vmatpush1.bf16.xpose.msra.mxu0 0
        %498 = vmatprep.subr.bf16.mxu0 0
        %499 = vmatpush1.bf16.xpose.msra.mxu0 %v482
        %500 = vmatprep.subr.bf16.mxu0 0
        %501 = vmatpush2.bf16.xpose.msra.mxu0 0
        %502 = vmatprep.subr.bf16.mxu0 0
        %503 = vmatpush2.bf16.xpose.msra.mxu0 0
        %504 = vmatprep.subr.bf16.mxu0 0
        %505 = vmatpush2.bf16.xpose.msra.mxu0 0
        %506 = vmatprep.subr.bf16.mxu0 0
        %507 = vmatpush2.bf16.xpose.msra.mxu0 0
        %508 = vmatprep.subr.bf16.mxu0 0
        %509 = vmatpush2.bf16.xpose.msra.mxu0 0
        %510 = vmatprep.subr.bf16.mxu0 0
        %511 = vmatpush2.bf16.xpose.msra.mxu0 0
        %512 = vmatprep.subr.bf16.mxu0 0
        %513 = vmatpush2.bf16.xpose.msra.mxu0 0
        %514 = vmatprep.subr.bf16.mxu0 0
        %515 = vmatpush2.bf16.xpose.msra.mxu0 0
        %516 = vmatprep.mubr.bf16.mxu0 0
        %517 = vmatmul.mubr.bf16.gmra.mxu0 %v479
        %v518 = vpop.f32.mrf.mxu0
        %v519 = vadd.f32 0.0, %v518
        %v520 = vpop.f32.mrf.mxu0
        %v521 = vpop.f32.mrf.mxu0
        %v522 = vadd.f32 0.0, %v521
        %v523 = vpop.f32.mrf.mxu0
        %524 = vdwg.mxu0
        %vm525 = vcmask 64512
        %v526 = vsel %vm525, %v519, -inf
        %527 = vmax.xlane.f32.xlu0 %v526
        %v528 = vpop.xlane.xlu0 %527
        %v529 = vsel %vm525, %v522, -inf
        %530 = vmax.xlane.f32.xlu0 %v529
        %v531 = vpop.xlane.xlu0 %530
        %v532 = vsub.f32 %v519, %v528
        %v533 = vsub.f32 %v522, %v531
        %v534 = vmul.f32 %v532, 1.442695
        %v535 = vpow.pop %v534
        %v536 = vmul.f32 %v533, 1.442695
        %v537 = vpow.pop %v536
        %v538 = vsel %vm525, %v535, 0.0
        %539 = vadd.xlane.f32.xlu0 %v538
        %v540 = vpop.xlane.xlu0 %539
        %v541 = vsel %vm525, %v537, 0.0
        %542 = vadd.xlane.f32.xlu0 %v541
        %v543 = vpop.xlane.xlu0 %542
        %v544 = vrcp.pop %v540
        %v545 = vrcp.pop %v543
        %v546 = vmul.f32 %v535, %v544
        %v547 = vmul.f32 %v537, %v545
        %v548 = vpack.c.bf16 %v547, %v546
        %v550 = vsel %vm525, %v548, 0
        %vm552 = vcmask 1043456
        %v554 = vsel %vm552, %v471, 0
        %556 = vmatprep.subr.bf16.mxu0 0
        %557 = vmatpush1.bf16.msra.mxu0 0
        %558 = vmatprep.subr.bf16.mxu0 0
        %559 = vmatpush1.bf16.msra.mxu0 0
        %560 = vmatprep.subr.bf16.mxu0 0
        %561 = vmatpush1.bf16.msra.mxu0 0
        %562 = vmatprep.subr.bf16.mxu0 0
        %563 = vmatpush1.bf16.msra.mxu0 0
        %564 = vmatprep.subr.bf16.mxu0 0
        %565 = vmatpush1.bf16.msra.mxu0 0
        %566 = vmatprep.subr.bf16.mxu0 0
        %567 = vmatpush1.bf16.msra.mxu0 0
        %568 = vmatprep.subr.bf16.mxu0 0
        %569 = vmatpush1.bf16.msra.mxu0 0
        %570 = vmatprep.subr.bf16.mxu0 0
        %571 = vmatpush1.bf16.msra.mxu0 %v554
        %572 = vmatprep.subr.bf16.mxu0 0
        %573 = vmatpush2.bf16.msra.mxu0 0
        %574 = vmatprep.subr.bf16.mxu0 0
        %575 = vmatpush2.bf16.msra.mxu0 0
        %576 = vmatprep.subr.bf16.mxu0 0
        %577 = vmatpush2.bf16.msra.mxu0 0
        %578 = vmatprep.subr.bf16.mxu0 0
        %579 = vmatpush2.bf16.msra.mxu0 0
        %580 = vmatprep.subr.bf16.mxu0 0
        %581 = vmatpush2.bf16.msra.mxu0 0
        %582 = vmatprep.subr.bf16.mxu0 0
        %583 = vmatpush2.bf16.msra.mxu0 0
        %584 = vmatprep.subr.bf16.mxu0 0
        %585 = vmatpush2.bf16.msra.mxu0 0
        %586 = vmatprep.subr.bf16.mxu0 0
        %587 = vmatpush2.bf16.msra.mxu0 0
        %588 = vmatprep.mubr.bf16.mxu0 0
        %589 = vmatmul.mubr.bf16.gmra.mxu0 %v550
        %v590 = vpop.f32.mrf.mxu0
        %v591 = vadd.f32 0.0, %v590
        %v592 = vpop.f32.mrf.mxu0
        %v593 = vpop.f32.mrf.mxu0
        %v594 = vadd.f32 0.0, %v593
        %v595 = vpop.f32.mrf.mxu0
        %596 = vdwg.mxu0
        %597 = vrot.lane.b32.xlu0 %v476, 96
        %v598 = vpop.permute.xlu0 %597
        %v600 = vunpack.c.l.b16 %v470
        %v601 = vpack.c.b16 %v600, %v600
        %602 = vrot.lane.b32.xlu0 %v601, 96
        %v603 = vpop.permute.xlu0 %602
        %v605 = vsel %vm477, %v598, 0
        %v608 = vsel %vm477, %v603, 0
        %610 = vmatprep.subr.bf16.mxu0 0
        %611 = vmatpush1.bf16.xpose.msra.mxu0 0
        %612 = vmatprep.subr.bf16.mxu0 0
        %613 = vmatpush1.bf16.xpose.msra.mxu0 0
        %614 = vmatprep.subr.bf16.mxu0 0
        %615 = vmatpush1.bf16.xpose.msra.mxu0 0
        %616 = vmatprep.subr.bf16.mxu0 0
        %617 = vmatpush1.bf16.xpose.msra.mxu0 0
        %618 = vmatprep.subr.bf16.mxu0 0
        %619 = vmatpush1.bf16.xpose.msra.mxu0 0
        %620 = vmatprep.subr.bf16.mxu0 0
        %621 = vmatpush1.bf16.xpose.msra.mxu0 0
        %622 = vmatprep.subr.bf16.mxu0 0
        %623 = vmatpush1.bf16.xpose.msra.mxu0 0
        %624 = vmatprep.subr.bf16.mxu0 0
        %625 = vmatpush1.bf16.xpose.msra.mxu0 %v608
        %626 = vmatprep.subr.bf16.mxu0 0
        %627 = vmatpush2.bf16.xpose.msra.mxu0 0
        %628 = vmatprep.subr.bf16.mxu0 0
        %629 = vmatpush2.bf16.xpose.msra.mxu0 0
        %630 = vmatprep.subr.bf16.mxu0 0
        %631 = vmatpush2.bf16.xpose.msra.mxu0 0
        %632 = vmatprep.subr.bf16.mxu0 0
        %633 = vmatpush2.bf16.xpose.msra.mxu0 0
        %634 = vmatprep.subr.bf16.mxu0 0
        %635 = vmatpush2.bf16.xpose.msra.mxu0 0
        %636 = vmatprep.subr.bf16.mxu0 0
        %637 = vmatpush2.bf16.xpose.msra.mxu0 0
        %638 = vmatprep.subr.bf16.mxu0 0
        %639 = vmatpush2.bf16.xpose.msra.mxu0 0
        %640 = vmatprep.subr.bf16.mxu0 0
        %641 = vmatpush2.bf16.xpose.msra.mxu0 0
        %642 = vmatprep.mubr.bf16.mxu0 0
        %643 = vmatmul.mubr.bf16.gmra.mxu0 %v605
        %v644 = vpop.f32.mrf.mxu0
        %v645 = vadd.f32 0.0, %v644
        %v646 = vpop.f32.mrf.mxu0
        %v647 = vpop.f32.mrf.mxu0
        %v648 = vadd.f32 0.0, %v647
        %v649 = vpop.f32.mrf.mxu0
        %650 = vdwg.mxu0
        %v651 = vsel %vm525, %v645, -inf
        %652 = vmax.xlane.f32.xlu0 %v651
        %v653 = vpop.xlane.xlu0 %652
        %v654 = vsel %vm525, %v648, -inf
        %655 = vmax.xlane.f32.xlu0 %v654
        %v656 = vpop.xlane.xlu0 %655
        %v657 = vsub.f32 %v645, %v653
        %v658 = vsub.f32 %v648, %v656
        %v659 = vmul.f32 %v657, 1.442695
        %v660 = vpow.pop %v659
        %v661 = vmul.f32 %v658, 1.442695
        %v662 = vpow.pop %v661
        %v663 = vsel %vm525, %v660, 0.0
        %664 = vadd.xlane.f32.xlu0 %v663
        %v665 = vpop.xlane.xlu0 %664
        %v666 = vsel %vm525, %v662, 0.0
        %667 = vadd.xlane.f32.xlu0 %v666
        %v668 = vpop.xlane.xlu0 %667
        %v669 = vrcp.pop %v665
        %v670 = vrcp.pop %v668
        %v671 = vmul.f32 %v660, %v669
        %v672 = vmul.f32 %v662, %v670
        %v673 = vpack.c.bf16 %v672, %v671
        %v675 = vunpack.c.l.b16 %v471
        %v676 = vpack.c.b16 %v675, %v675
        %677 = vrot.lane.b32.xlu0 %v676, 96
        %v678 = vpop.permute.xlu0 %677
        %v680 = vsel %vm525, %v673, 0
        %v683 = vsel %vm552, %v678, 0
        %685 = vmatprep.subr.bf16.mxu0 0
        %686 = vmatpush1.bf16.msra.mxu0 0
        %687 = vmatprep.subr.bf16.mxu0 0
        %688 = vmatpush1.bf16.msra.mxu0 0
        %689 = vmatprep.subr.bf16.mxu0 0
        %690 = vmatpush1.bf16.msra.mxu0 0
        %691 = vmatprep.subr.bf16.mxu0 0
        %692 = vmatpush1.bf16.msra.mxu0 0
        %693 = vmatprep.subr.bf16.mxu0 0
        %694 = vmatpush1.bf16.msra.mxu0 0
        %695 = vmatprep.subr.bf16.mxu0 0
        %696 = vmatpush1.bf16.msra.mxu0 0
        %697 = vmatprep.subr.bf16.mxu0 0
        %698 = vmatpush1.bf16.msra.mxu0 0
        %699 = vmatprep.subr.bf16.mxu0 0
        %700 = vmatpush1.bf16.msra.mxu0 %v683
        %701 = vmatprep.subr.bf16.mxu0 0
        %702 = vmatpush2.bf16.msra.mxu0 0
        %703 = vmatprep.subr.bf16.mxu0 0
        %704 = vmatpush2.bf16.msra.mxu0 0
        %705 = vmatprep.subr.bf16.mxu0 0
        %706 = vmatpush2.bf16.msra.mxu0 0
        %707 = vmatprep.subr.bf16.mxu0 0
        %708 = vmatpush2.bf16.msra.mxu0 0
        %709 = vmatprep.subr.bf16.mxu0 0
        %710 = vmatpush2.bf16.msra.mxu0 0
        %711 = vmatprep.subr.bf16.mxu0 0
        %712 = vmatpush2.bf16.msra.mxu0 0
        %713 = vmatprep.subr.bf16.mxu0 0
        %714 = vmatpush2.bf16.msra.mxu0 0
        %715 = vmatprep.subr.bf16.mxu0 0
        %716 = vmatpush2.bf16.msra.mxu0 0
        %717 = vmatprep.mubr.bf16.mxu0 0
        %718 = vmatmul.mubr.bf16.gmra.mxu0 %v680
        %v719 = vpop.f32.mrf.mxu0
        %v720 = vadd.f32 0.0, %v719
        %v721 = vpop.f32.mrf.mxu0
        %v722 = vpop.f32.mrf.mxu0
        %v723 = vadd.f32 0.0, %v722
        %v724 = vpop.f32.mrf.mxu0
        %725 = vdwg.mxu0
        %726 = vrot.lane.b32.xlu0 %v476, 64
        %v727 = vpop.permute.xlu0 %726
        %728 = vrot.lane.b32.xlu0 %v601, 64
        %v729 = vpop.permute.xlu0 %728
        %v731 = vsel %vm477, %v727, 0
        %v734 = vsel %vm477, %v729, 0
        %736 = vmatprep.subr.bf16.mxu0 0
        %737 = vmatpush1.bf16.xpose.msra.mxu0 0
        %738 = vmatprep.subr.bf16.mxu0 0
        %739 = vmatpush1.bf16.xpose.msra.mxu0 0
        %740 = vmatprep.subr.bf16.mxu0 0
        %741 = vmatpush1.bf16.xpose.msra.mxu0 0
        %742 = vmatprep.subr.bf16.mxu0 0
        %743 = vmatpush1.bf16.xpose.msra.mxu0 0
        %744 = vmatprep.subr.bf16.mxu0 0
        %745 = vmatpush1.bf16.xpose.msra.mxu0 0
        %746 = vmatprep.subr.bf16.mxu0 0
        %747 = vmatpush1.bf16.xpose.msra.mxu0 0
        %748 = vmatprep.subr.bf16.mxu0 0
        %749 = vmatpush1.bf16.xpose.msra.mxu0 0
        %750 = vmatprep.subr.bf16.mxu0 0
        %751 = vmatpush1.bf16.xpose.msra.mxu0 %v734
        %752 = vmatprep.subr.bf16.mxu0 0
        %753 = vmatpush2.bf16.xpose.msra.mxu0 0
        %754 = vmatprep.subr.bf16.mxu0 0
        %755 = vmatpush2.bf16.xpose.msra.mxu0 0
        %756 = vmatprep.subr.bf16.mxu0 0
        %757 = vmatpush2.bf16.xpose.msra.mxu0 0
        %758 = vmatprep.subr.bf16.mxu0 0
        %759 = vmatpush2.bf16.xpose.msra.mxu0 0
        %760 = vmatprep.subr.bf16.mxu0 0
        %761 = vmatpush2.bf16.xpose.msra.mxu0 0
        %762 = vmatprep.subr.bf16.mxu0 0
        %763 = vmatpush2.bf16.xpose.msra.mxu0 0
        %764 = vmatprep.subr.bf16.mxu0 0
        %765 = vmatpush2.bf16.xpose.msra.mxu0 0
        %766 = vmatprep.subr.bf16.mxu0 0
        %767 = vmatpush2.bf16.xpose.msra.mxu0 0
        %768 = vmatprep.mubr.bf16.mxu0 0
        %769 = vmatmul.mubr.bf16.gmra.mxu0 %v731
        %v770 = vpop.f32.mrf.mxu0
        %v771 = vadd.f32 0.0, %v770
        %v772 = vpop.f32.mrf.mxu0
        %v773 = vpop.f32.mrf.mxu0
        %v774 = vadd.f32 0.0, %v773
        %v775 = vpop.f32.mrf.mxu0
        %776 = vdwg.mxu0
        %v777 = vsel %vm525, %v771, -inf
        %778 = vmax.xlane.f32.xlu0 %v777
        %v779 = vpop.xlane.xlu0 %778
        %v780 = vsel %vm525, %v774, -inf
        %781 = vmax.xlane.f32.xlu0 %v780
        %v782 = vpop.xlane.xlu0 %781
        %v783 = vsub.f32 %v771, %v779
        %v784 = vsub.f32 %v774, %v782
        %v785 = vmul.f32 %v783, 1.442695
        %v786 = vpow.pop %v785
        %v787 = vmul.f32 %v784, 1.442695
        %v788 = vpow.pop %v787
        %v789 = vsel %vm525, %v786, 0.0
        %790 = vadd.xlane.f32.xlu0 %v789
        %v791 = vpop.xlane.xlu0 %790
        %v792 = vsel %vm525, %v788, 0.0
        %793 = vadd.xlane.f32.xlu0 %v792
        %v794 = vpop.xlane.xlu0 %793
        %v795 = vrcp.pop %v791
        %v796 = vrcp.pop %v794
        %v797 = vmul.f32 %v786, %v795
        %v798 = vmul.f32 %v788, %v796
        %v799 = vpack.c.bf16 %v798, %v797
        %800 = vrot.lane.b32.xlu0 %v676, 64
        %v801 = vpop.permute.xlu0 %800
        %v803 = vsel %vm525, %v799, 0
        %v806 = vsel %vm552, %v801, 0
        %808 = vmatprep.subr.bf16.mxu0 0
        %809 = vmatpush1.bf16.msra.mxu0 0
        %810 = vmatprep.subr.bf16.mxu0 0
        %811 = vmatpush1.bf16.msra.mxu0 0
        %812 = vmatprep.subr.bf16.mxu0 0
        %813 = vmatpush1.bf16.msra.mxu0 0
        %814 = vmatprep.subr.bf16.mxu0 0
        %815 = vmatpush1.bf16.msra.mxu0 0
        %816 = vmatprep.subr.bf16.mxu0 0
        %817 = vmatpush1.bf16.msra.mxu0 0
        %818 = vmatprep.subr.bf16.mxu0 0
        %819 = vmatpush1.bf16.msra.mxu0 0
        %820 = vmatprep.subr.bf16.mxu0 0
        %821 = vmatpush1.bf16.msra.mxu0 0
        %822 = vmatprep.subr.bf16.mxu0 0
        %823 = vmatpush1.bf16.msra.mxu0 %v806
        %824 = vmatprep.subr.bf16.mxu0 0
        %825 = vmatpush2.bf16.msra.mxu0 0
        %826 = vmatprep.subr.bf16.mxu0 0
        %827 = vmatpush2.bf16.msra.mxu0 0
        %828 = vmatprep.subr.bf16.mxu0 0
        %829 = vmatpush2.bf16.msra.mxu0 0
        %830 = vmatprep.subr.bf16.mxu0 0
        %831 = vmatpush2.bf16.msra.mxu0 0
        %832 = vmatprep.subr.bf16.mxu0 0
        %833 = vmatpush2.bf16.msra.mxu0 0
        %834 = vmatprep.subr.bf16.mxu0 0
        %835 = vmatpush2.bf16.msra.mxu0 0
        %836 = vmatprep.subr.bf16.mxu0 0
        %837 = vmatpush2.bf16.msra.mxu0 0
        %838 = vmatprep.subr.bf16.mxu0 0
        %839 = vmatpush2.bf16.msra.mxu0 0
        %840 = vmatprep.mubr.bf16.mxu0 0
        %841 = vmatmul.mubr.bf16.gmra.mxu0 %v803
        %v842 = vpop.f32.mrf.mxu0
        %v843 = vadd.f32 0.0, %v842
        %v844 = vpop.f32.mrf.mxu0
        %v845 = vpop.f32.mrf.mxu0
        %v846 = vadd.f32 0.0, %v845
        %v847 = vpop.f32.mrf.mxu0
        %848 = vdwg.mxu0
        %849 = vrot.lane.b32.xlu0 %v476, 32
        %v850 = vpop.permute.xlu0 %849
        %851 = vrot.lane.b32.xlu0 %v601, 32
        %v852 = vpop.permute.xlu0 %851
        %v854 = vsel %vm477, %v850, 0
        %v857 = vsel %vm477, %v852, 0
        %859 = vmatprep.subr.bf16.mxu0 0
        %860 = vmatpush1.bf16.xpose.msra.mxu0 0
        %861 = vmatprep.subr.bf16.mxu0 0
        %862 = vmatpush1.bf16.xpose.msra.mxu0 0
        %863 = vmatprep.subr.bf16.mxu0 0
        %864 = vmatpush1.bf16.xpose.msra.mxu0 0
        %865 = vmatprep.subr.bf16.mxu0 0
        %866 = vmatpush1.bf16.xpose.msra.mxu0 0
        %867 = vmatprep.subr.bf16.mxu0 0
        %868 = vmatpush1.bf16.xpose.msra.mxu0 0
        %869 = vmatprep.subr.bf16.mxu0 0
        %870 = vmatpush1.bf16.xpose.msra.mxu0 0
        %871 = vmatprep.subr.bf16.mxu0 0
        %872 = vmatpush1.bf16.xpose.msra.mxu0 0
        %873 = vmatprep.subr.bf16.mxu0 0
        %874 = vmatpush1.bf16.xpose.msra.mxu0 %v857
        %875 = vmatprep.subr.bf16.mxu0 0
        %876 = vmatpush2.bf16.xpose.msra.mxu0 0
        %877 = vmatprep.subr.bf16.mxu0 0
        %878 = vmatpush2.bf16.xpose.msra.mxu0 0
        %879 = vmatprep.subr.bf16.mxu0 0
        %880 = vmatpush2.bf16.xpose.msra.mxu0 0
        %881 = vmatprep.subr.bf16.mxu0 0
        %882 = vmatpush2.bf16.xpose.msra.mxu0 0
        %883 = vmatprep.subr.bf16.mxu0 0
        %884 = vmatpush2.bf16.xpose.msra.mxu0 0
        %885 = vmatprep.subr.bf16.mxu0 0
        %886 = vmatpush2.bf16.xpose.msra.mxu0 0
        %887 = vmatprep.subr.bf16.mxu0 0
        %888 = vmatpush2.bf16.xpose.msra.mxu0 0
        %889 = vmatprep.subr.bf16.mxu0 0
        %890 = vmatpush2.bf16.xpose.msra.mxu0 0
        %891 = vmatprep.mubr.bf16.mxu0 0
        %892 = vmatmul.mubr.bf16.gmra.mxu0 %v854
        %v893 = vpop.f32.mrf.mxu0
        %v894 = vadd.f32 0.0, %v893
        %v895 = vpop.f32.mrf.mxu0
        %v896 = vpop.f32.mrf.mxu0
        %v897 = vadd.f32 0.0, %v896
        %v898 = vpop.f32.mrf.mxu0
        %899 = vdwg.mxu0
        %v900 = vsel %vm525, %v894, -inf
        %901 = vmax.xlane.f32.xlu0 %v900
        %v902 = vpop.xlane.xlu0 %901
        %v903 = vsel %vm525, %v897, -inf
        %904 = vmax.xlane.f32.xlu0 %v903
        %v905 = vpop.xlane.xlu0 %904
        %v906 = vsub.f32 %v894, %v902
        %v907 = vsub.f32 %v897, %v905
        %v908 = vmul.f32 %v906, 1.442695
        %v909 = vpow.pop %v908
        %v910 = vmul.f32 %v907, 1.442695
        %v911 = vpow.pop %v910
        %v912 = vsel %vm525, %v909, 0.0
        %913 = vadd.xlane.f32.xlu0 %v912
        %v914 = vpop.xlane.xlu0 %913
        %v915 = vsel %vm525, %v911, 0.0
        %916 = vadd.xlane.f32.xlu0 %v915
        %v917 = vpop.xlane.xlu0 %916
        %v918 = vrcp.pop %v914
        %v919 = vrcp.pop %v917
        %v920 = vmul.f32 %v909, %v918
        %v921 = vmul.f32 %v911, %v919
        %v922 = vpack.c.bf16 %v921, %v920
        %923 = vrot.lane.b32.xlu0 %v676, 32
        %v924 = vpop.permute.xlu0 %923
        %v926 = vsel %vm525, %v922, 0
        %v929 = vsel %vm552, %v924, 0
        %931 = vmatprep.subr.bf16.mxu0 0
        %932 = vmatpush1.bf16.msra.mxu0 0
        %933 = vmatprep.subr.bf16.mxu0 0
        %934 = vmatpush1.bf16.msra.mxu0 0
        %935 = vmatprep.subr.bf16.mxu0 0
        %936 = vmatpush1.bf16.msra.mxu0 0
        %937 = vmatprep.subr.bf16.mxu0 0
        %938 = vmatpush1.bf16.msra.mxu0 0
        %939 = vmatprep.subr.bf16.mxu0 0
        %940 = vmatpush1.bf16.msra.mxu0 0
        %941 = vmatprep.subr.bf16.mxu0 0
        %942 = vmatpush1.bf16.msra.mxu0 0
        %943 = vmatprep.subr.bf16.mxu0 0
        %944 = vmatpush1.bf16.msra.mxu0 0
        %945 = vmatprep.subr.bf16.mxu0 0
        %946 = vmatpush1.bf16.msra.mxu0 %v929
        %947 = vmatprep.subr.bf16.mxu0 0
        %948 = vmatpush2.bf16.msra.mxu0 0
        %949 = vmatprep.subr.bf16.mxu0 0
        %950 = vmatpush2.bf16.msra.mxu0 0
        %951 = vmatprep.subr.bf16.mxu0 0
        %952 = vmatpush2.bf16.msra.mxu0 0
        %953 = vmatprep.subr.bf16.mxu0 0
        %954 = vmatpush2.bf16.msra.mxu0 0
        %955 = vmatprep.subr.bf16.mxu0 0
        %956 = vmatpush2.bf16.msra.mxu0 0
        %957 = vmatprep.subr.bf16.mxu0 0
        %958 = vmatpush2.bf16.msra.mxu0 0
        %959 = vmatprep.subr.bf16.mxu0 0
        %960 = vmatpush2.bf16.msra.mxu0 0
        %961 = vmatprep.subr.bf16.mxu0 0
        %962 = vmatpush2.bf16.msra.mxu0 0
        %963 = vmatprep.mubr.bf16.mxu0 0
        %964 = vmatmul.mubr.bf16.gmra.mxu0 %v926
        %v965 = vpop.f32.mrf.mxu0
        %v966 = vadd.f32 0.0, %v965
        %v967 = vpop.f32.mrf.mxu0
        %v968 = vpop.f32.mrf.mxu0
        %v969 = vadd.f32 0.0, %v968
        %v970 = vpop.f32.mrf.mxu0
        %971 = vdwg.mxu0
        %974 = vrot.lane.b32.xlu0 %v720, 32
        %v975 = vpop.permute.xlu0 %974
        %976 = vrot.lane.b32.xlu0 %v723, 32
        %v977 = vpop.permute.xlu0 %976
        %982 = vrot.lane.b32.xlu0 %v843, 64
        %v983 = vpop.permute.xlu0 %982
        %984 = vrot.lane.b32.xlu0 %v846, 64
        %v985 = vpop.permute.xlu0 %984
        %990 = vrot.lane.b32.xlu0 %v966, 96
        %v991 = vpop.permute.xlu0 %990
        %992 = vrot.lane.b32.xlu0 %v969, 96
        %v993 = vpop.permute.xlu0 %992
        %v996 = vsel %vm477, %v591, %v975
        %v997 = vsel %vm477, %v594, %v977
        %vm998 = vcmask 523264
        %v999 = vsel %vm998, %v996, %v983
        %v1000 = vsel %vm998, %v997, %v985
        %vm1001 = vcmask 785408
        %v1002 = vsel %vm1001, %v999, %v991
        %v1003 = vsel %vm1001, %v1000, %v993
        %1004 = vst [vmem:[%s350] sm:$0xff] %v1002
        %1005 = vst [vmem:[%s350 + $0x8] sm:$0xff] %v1003
        %s1006 = sand.u32 %s170, 1
        %s1007 = scalar_lea.sflag [#allocation6], %s1006
        %s1008 = sand.u32 %s170, 1
        %s1009 = smul.addr %s1008, 16
        %s1010 = scalar_lea.vmem [#allocation12], %s1009
        // Predicated region
        $region61: #{tpu_custom_call.1} parent=39 // pred_check
          %p1011 = pneg %p180
        $region62: #{tpu_custom_call.1} parent=39 // pred_check_branch
          %1013 = sbr.rel (%p1011) target = $region64
        $region63: #{tpu_custom_call.1} parent=39 // pred_region
          %s1014 = smul.u32 2, %s31
          %s1016 = ssub.s32 256, 256
          %1017 = vsyncadd %s1007, %s1016
          %s1018 = smul.addr %s30, 2
          %s1019 = sadd.s32 %s1014, %s1018
          %s1020 = smul.addr %s1019, 128
          %s1021 = scalar_lea.hbm %s5, %s1020
          %s1022 = sshll.u32 %s1010, 4
          %s1023 = int_to_ptr.vmem [resolvable:$true] %s1022
          %1028 = dma.vmem_to_hbm [thread:$0]  %s1023, 256, %s1021, %s1007, 128, 128, 8
        $region64: #{tpu_custom_call.1} parent=39 // pred_fallthru
          _
      $region40: #{tpu_custom_call.1} parent=5 // pred_fallthru
        _
      %p1029 = scmp.le.s32.totalorder 2, %s21
      // Predicated region
      $region65: #{tpu_custom_call.1} parent=5 // pred_check
        %p1030 = pneg %p1029
      $region66: #{tpu_custom_call.1} parent=5 // pred_check_branch
        %1032 = sbr.rel (%p1030) target = $region68
      $region67: #{tpu_custom_call.1} parent=5 // pred_region
        %s1033 = ssub.s32 %s21, 2
        // Predicated region
        $region69: #{tpu_custom_call.1} parent=67 // pred_check
          %p1034 = pneg %p186
        $region70: #{tpu_custom_call.1} parent=67 // pred_check_branch
          %1036 = sbr.rel (%p1034) target = $region72
        $region71: #{tpu_custom_call.1} parent=67 // pred_region
          %s1037 = sand.u32 %s171, 1
          %s1038 = scalar_lea.sflag [#allocation6], %s1037
          %s1039 = sand.u32 %s171, 1
          %s1040 = smul.addr %s1039, 16
          %s1041 = scalar_lea.vmem [#allocation12], %s1040
          %1042 = dma.done %s1038, 256
        $region72: #{tpu_custom_call.1} parent=67 // pred_fallthru
          _
      $region68: #{tpu_custom_call.1} parent=5 // pred_fallthru
        _
    $region6: #{tpu_custom_call.1} parent=1 // loop_footer
      %s25 = sadd.s32 1, %s21
    $region7: #{tpu_custom_call.1} parent=1 // loop_footer_branch
      %20 = sbr.rel target = $region3
    $region8: #{tpu_custom_call.1} parent=1 // loop_exit
      _
    %1043 = vsyncpa [#allocation5], 1
    %s1044 = scalar_lea.sflag [#allocation5], 1
    %1045 = vsyncpa %s1044, 1
    %1046 = vsyncpa [#allocation8], 1
    %s1047 = scalar_lea.sflag [#allocation8], 1
    %1048 = vsyncpa %s1047, 1
    %1049 = vsyncpa [#allocation11], 1
    %1050 = vsyncpa [#allocation6], 1
    %s1051 = scalar_lea.sflag [#allocation6], 1
    %1052 = vsyncpa %s1051, 1

// kernel: tpu_custom_call.1
$region0: #{tpu_custom_call.1}
  #allocation0 [shape = 'u32[]', space=smem, size = 0x4, offset = 0x4, fixed_abs, tag = 'smem constant byte address 0x4 - core index']
  #allocation1 [shape = 'u32[144,128]{1,0:T(1,128)}', space=vmem, size = 0x12000, scoped, tag = 'internal scratch']
  #allocation2 [shape = 'bf16[8,128]{1,0:T(8,128)(2,1)}', space=vmem, size = 0x800, scoped, tag = 'scratch operand']
  #allocation3 [shape = 'bf16[8,128]{1,0:T(8,128)(2,1)}', space=vmem, size = 0x800, scoped, tag = 'scratch operand']
  %s0 = inlined_call_operand.hbm [shape: bf16[2,16,128], index: 0, kind: input, shape index: {}]
  %s1 = inlined_call_operand.hbm [shape: bf16[2,16,128], index: 1, kind: input, shape index: {}]
  %s2 = inlined_call_operand.hbm [shape: bf16[2,16,128], index: 2, kind: input, shape index: {}]
  %s3 = inlined_call_operand.vmem [shape: bf16[8,16], index: 3, kind: input, shape index: {}]
  %s4 = inlined_call_operand.hbm [shape: bf16[8,16], index: 4, kind: input, shape index: {}]
  %s5 = inlined_call_operand.hbm [shape: f32[2,16,128], index: 5, kind: output, shape index: {}]
  %s6 = sld [smem:[#allocation0]]
  $region73: #{tpu_custom_call.1} parent=0
    _
  %s8 = ssub.s32 1, %s6
  %s9 = scalar_select 0, %s8, %s6
  $region1: #{tpu_custom_call.1} parent=0
    #allocation4 [shape = 'u8[8192]{0}', space=vmem, size = 0x2000, scoped, tag = 'input window, operand 0']
    #allocation5 [shape = 's32[2]{0}', space=sflag, size = 0x8, scoped, tag = 'scoped memory for tpu_custom_call.1']
    #allocation6 [shape = 's32[2]{0}', space=sflag, size = 0x8, scoped, tag = 'scoped memory for tpu_custom_call.1']
    #allocation7 [shape = 'u8[8192]{0}', space=vmem, size = 0x2000, scoped, tag = 'input window, operand 1']
    #allocation8 [shape = 's32[2]{0}', space=sflag, size = 0x8, scoped, tag = 'scoped memory for tpu_custom_call.1']
    #allocation9 [shape = 'u8[8192]{0}', space=vmem, size = 0x2000, scoped, tag = 'input window, operand 2']
    #allocation10 [shape = 'u8[2048]{0}', space=vmem, size = 0x800, scoped, tag = 'input window, operand 4, single buffered']
    #allocation11 [shape = 's32[1]{0}', space=sflag, size = 0x4, scoped, tag = 'scoped memory for tpu_custom_call.1']
    #allocation12 [shape = 'u8[16384]{0}', space=vmem, size = 0x4000, scoped, tag = 'output window, operand 0']
    %10 = vsyncpa [#allocation5], 0
    %s11 = scalar_lea.sflag [#allocation5], 1
    %12 = vsyncpa %s11, 0
    %13 = vsyncpa [#allocation8], 0
    %s14 = scalar_lea.sflag [#allocation8], 1
    %15 = vsyncpa %s14, 0
    %16 = vsyncpa [#allocation11], 0
    %17 = vsyncpa [#allocation6], 0
    %s18 = scalar_lea.sflag [#allocation6], 1
    %19 = vsyncpa %s18, 0
    loop: start=0, step=1, limit=4
    $region2: #{tpu_custom_call.1} parent=1 // loop_pre_header
      _
    $region3: #{tpu_custom_call.1} parent=1 // loop_header
      %s21 = sphi 0, %s25
      %p22 = scmp.ge.s32.totalorder %s21, 4
      %s28 = sphi 0, %s40
      %s29 = sphi 0, %s36
      %s30 = sphi 0, %s28
      %s31 = sphi 0, %s29
      %s32 = sphi 0, %s30
      %s33 = sphi 0, %s31
      %s45 = sphi 0, %s47
      %s48 = sphi 0, %s45
      %s49 = sphi 0, %s48
      %s65 = sphi 0, %s49
      %s71 = sphi 0, %s73
      %s74 = sphi 0, %s71
      %s75 = sphi 0, %s74
      %s91 = sphi 0, %s75
      %s97 = sphi 0, %s99
      %s100 = sphi 0, %s97
      %s101 = sphi 0, %s100
      %s117 = sphi 0, %s101
      %s121 = sphi 0, %s121
      %s123 = sphi 0, %s121
      %s124 = sphi 0, %s123
      %s138 = sphi 0, %s124
      %s142 = sphi 0, %s142
      %s144 = sphi 0, %s142
      %s145 = sphi 0, %s144
      %s159 = sphi 0, %s145
      %s167 = sphi 0, %s169
      %s170 = sphi 0, %s167
      %s171 = sphi 0, %s170
      %s187 = sphi 0, %s171
    $region4: #{tpu_custom_call.1} parent=1 // loop_header_branch
      %24 = sbr.rel (%p22) target = $region8
    $region5: #{tpu_custom_call.1} parent=1 // loop_body
      %s26 = ssub.s32 %s21, 1
      %s27 = ssub.s32 %s21, 2
      %s34 = sadd.s32 1, %s29
      %p35 = scmp.ge.s32.totalorder %s34, 1
      %s36 = scalar_select %p35, 0, %s34
      %s37 = sadd.s32 1, %s28
      %s38 = scalar_select %p35, %s37, %s28
      %p39 = scmp.ge.s32.totalorder %s38, 2
      %s40 = scalar_select %p39, 0, %s38
      %s41 = ssub.s32 %s28, %s40
      %s42 = ssub.s32 %s29, %s36
      %s43 = sor.u32 %s41, %s42
      %p44 = scmp.eq.s32.totalorder %s43, 0
      %s46 = sadd.s32 %s45, 1
      %s47 = scalar_select %p44, %s45, %s46
      %p50 = pneg %p44
      %p51 = scmp.eq.s32.totalorder %s21, 1
      %p52 = por %p50, %p51
      %p53 = scmp.ne.s32.totalorder %s45, %s48
      %p54 = scmp.eq.s32.totalorder %s21, 0
      %p55 = por %p53, %p54
      %p56 = scmp.ne.s32.totalorder %s45, %s48
      %p57 = scmp.eq.s32.totalorder %s26, 1
      %p58 = por %p56, %p57
      %p59 = scmp.ne.s32.totalorder %s48, %s49
      %p60 = scmp.eq.s32.totalorder %s26, 0
      %p61 = por %p59, %p60
      %p62 = scmp.ne.s32.totalorder %s48, %s49
      %p63 = scmp.eq.s32.totalorder %s27, 1
      %p64 = por %p62, %p63
      %p66 = scmp.ne.s32.totalorder %s49, %s65
      %p67 = scmp.eq.s32.totalorder %s27, 0
      %p68 = por %p66, %p67
      %s69 = ssub.s32 %s28, %s40
      %p70 = scmp.eq.s32.totalorder %s69, 0
      %s72 = sadd.s32 %s71, 1
      %s73 = scalar_select %p70, %s71, %s72
      %p76 = pneg %p70
      %p77 = scmp.eq.s32.totalorder %s21, 1
      %p78 = por %p76, %p77
      %p79 = scmp.ne.s32.totalorder %s71, %s74
      %p80 = scmp.eq.s32.totalorder %s21, 0
      %p81 = por %p79, %p80
      %p82 = scmp.ne.s32.totalorder %s71, %s74
      %p83 = scmp.eq.s32.totalorder %s26, 1
      %p84 = por %p82, %p83
      %p85 = scmp.ne.s32.totalorder %s74, %s75
      %p86 = scmp.eq.s32.totalorder %s26, 0
      %p87 = por %p85, %p86
      %p88 = scmp.ne.s32.totalorder %s74, %s75
      %p89 = scmp.eq.s32.totalorder %s27, 1
      %p90 = por %p88, %p89
      %p92 = scmp.ne.s32.totalorder %s75, %s91
      %p93 = scmp.eq.s32.totalorder %s27, 0
      %p94 = por %p92, %p93
      %s95 = ssub.s32 %s28, %s40
      %p96 = scmp.eq.s32.totalorder %s95, 0
      %s98 = sadd.s32 %s97, 1
      %s99 = scalar_select %p96, %s97, %s98
      %p102 = pneg %p96
      %p103 = scmp.eq.s32.totalorder %s21, 1
      %p104 = por %p102, %p103
      %p105 = scmp.ne.s32.totalorder %s97, %s100
      %p106 = scmp.eq.s32.totalorder %s21, 0
      %p107 = por %p105, %p106
      %p108 = scmp.ne.s32.totalorder %s97, %s100
      %p109 = scmp.eq.s32.totalorder %s26, 1
      %p110 = por %p108, %p109
      %p111 = scmp.ne.s32.totalorder %s100, %s101
      %p112 = scmp.eq.s32.totalorder %s26, 0
      %p113 = por %p111, %p112
      %p114 = scmp.ne.s32.totalorder %s100, %s101
      %p115 = scmp.eq.s32.totalorder %s27, 1
      %p116 = por %p114, %p115
      %p118 = scmp.ne.s32.totalorder %s101, %s117
      %p119 = scmp.eq.s32.totalorder %s27, 0
      %p120 = por %p118, %p119
      %s122 = sadd.s32 %s121, 1
      %p125 = scmp.eq.s32.totalorder %s21, 1
      %p126 = scmp.ne.s32.totalorder %s121, %s123
      %p127 = scmp.eq.s32.totalorder %s21, 0
      %p128 = por %p126, %p127
      %p129 = scmp.ne.s32.totalorder %s121, %s123
      %p130 = scmp.eq.s32.totalorder %s26, 1
      %p131 = por %p129, %p130
      %p132 = scmp.ne.s32.totalorder %s123, %s124
      %p133 = scmp.eq.s32.totalorder %s26, 0
      %p134 = por %p132, %p133
      %p135 = scmp.ne.s32.totalorder %s123, %s124
      %p136 = scmp.eq.s32.totalorder %s27, 1
      %p137 = por %p135, %p136
      %p139 = scmp.ne.s32.totalorder %s124, %s138
      %p140 = scmp.eq.s32.totalorder %s27, 0
      %p141 = por %p139, %p140
      %s143 = sadd.s32 %s142, 1
      %p146 = scmp.eq.s32.totalorder %s21, 1
      %p147 = scmp.ne.s32.totalorder %s142, %s144
      %p148 = scmp.eq.s32.totalorder %s21, 0
      %p149 = por %p147, %p148
      %p150 = scmp.ne.s32.totalorder %s142, %s144
      %p151 = scmp.eq.s32.totalorder %s26, 1
      %p152 = por %p150, %p151
      %p153 = scmp.ne.s32.totalorder %s144, %s145
      %p154 = scmp.eq.s32.totalorder %s26, 0
      %p155 = por %p153, %p154
      %p156 = scmp.ne.s32.totalorder %s144, %s145
      %p157 = scmp.eq.s32.totalorder %s27, 1
      %p158 = por %p156, %p157
      %p160 = scmp.ne.s32.totalorder %s145, %s159
      %p161 = scmp.eq.s32.totalorder %s27, 0
      %p162 = por %p160, %p161
      %s163 = ssub.s32 %s28, %s40
      %s164 = ssub.s32 %s29, %s36
      %s165 = sor.u32 %s163, %s164
      %p166 = scmp.eq.s32.totalorder %s165, 0
      %s168 = sadd.s32 %s167, 1
      %s169 = scalar_select %p166, %s167, %s168
      %p172 = pneg %p166
      %p173 = scmp.eq.s32.totalorder %s21, 1
      %p174 = por %p172, %p173
      %p175 = scmp.ne.s32.totalorder %s167, %s170
      %p176 = scmp.eq.s32.totalorder %s21, 0
      %p177 = por %p175, %p176
      %p178 = scmp.ne.s32.totalorder %s167, %s170
      %p179 = scmp.eq.s32.totalorder %s26, 1
      %p180 = por %p178, %p179
      %p181 = scmp.ne.s32.totalorder %s170, %s171
      %p182 = scmp.eq.s32.totalorder %s26, 0
      %p183 = por %p181, %p182
      %p184 = scmp.ne.s32.totalorder %s170, %s171
      %p185 = scmp.eq.s32.totalorder %s27, 1
      %p186 = por %p184, %p185
      %p188 = scmp.ne.s32.totalorder %s171, %s187
      %p189 = scmp.eq.s32.totalorder %s27, 0
      %p190 = por %p188, %p189
      %p191 = scmp.le.s32.totalorder 1, %s21
      %p192 = scmp.lt.s32.totalorder %s21, 3
      %p193 = pnand %p191, %p192
      %p194 = pneg %p193
      // Predicated region
      $region9: #{tpu_custom_call.1} parent=5 // pred_check
        _
      $region10: #{tpu_custom_call.1} parent=5 // pred_check_branch
        %196 = sbr.rel (%p193) target = $region12
      $region11: #{tpu_custom_call.1} parent=5 // pred_region
        %s197 = ssub.s32 %s21, 1
        // Predicated region
        $region13: #{tpu_custom_call.1} parent=11 // pred_check
          %p198 = pneg %p134
        $region14: #{tpu_custom_call.1} parent=11 // pred_check_branch
          %200 = sbr.rel (%p198) target = $region16
        $region15: #{tpu_custom_call.1} parent=11 // pred_region
          _
        $region16: #{tpu_custom_call.1} parent=11 // pred_fallthru
          _
        // Predicated region
        $region17: #{tpu_custom_call.1} parent=11 // pred_check
          %p201 = pneg %p155
        $region18: #{tpu_custom_call.1} parent=11 // pred_check_branch
          %203 = sbr.rel (%p201) target = $region20
        $region19: #{tpu_custom_call.1} parent=11 // pred_region
          %s205 = ssub.s32 64, 64
          %206 = vsyncadd [#allocation11], %s205
          %s208 = sshll.u32 [#allocation10], 4
          %s209 = int_to_ptr.vmem [resolvable:$true] %s208
          %211 = dma.hbm_to_vmem [thread:$0]  %s4, 64, %s209, [#allocation11]
        $region20: #{tpu_custom_call.1} parent=11 // pred_fallthru
          _
      $region12: #{tpu_custom_call.1} parent=5 // pred_fallthru
        _
      %p212 = scmp.lt.s32.totalorder %s21, 2
      // Predicated region
      $region21: #{tpu_custom_call.1} parent=5 // pred_check
        %p213 = pneg %p212
      $region22: #{tpu_custom_call.1} parent=5 // pred_check_branch
        %215 = sbr.rel (%p213) target = $region24
      $region23: #{tpu_custom_call.1} parent=5 // pred_region
        // Predicated region
        $region25: #{tpu_custom_call.1} parent=23 // pred_check
          %p216 = pneg %p55
        $region26: #{tpu_custom_call.1} parent=23 // pred_check_branch
          %218 = sbr.rel (%p216) target = $region28
        $region27: #{tpu_custom_call.1} parent=23 // pred_region
          %s219 = sand.u32 %s45, 1
          %s220 = scalar_lea.sflag [#allocation5], %s219
          %s221 = sand.u32 %s45, 1
          %s222 = smul.addr %s221, 8
          %s223 = scalar_lea.vmem [#allocation4], %s222
          %s224 = smul.u32 2, %s29
          %s226 = ssub.s32 128, 128
          %227 = vsyncadd %s220, %s226
          %s228 = smul.addr %s28, 2
          %s229 = sadd.s32 %s224, %s228
          %s230 = smul.addr %s229, 64
          %s231 = scalar_lea.hbm %s0, %s230
          %s232 = sshll.u32 %s223, 4
          %s233 = int_to_ptr.vmem [resolvable:$true] %s232
          %238 = dma.hbm_to_vmem [thread:$0]  %s231, 128, %s233, %s220, 64, 64, 4
        $region28: #{tpu_custom_call.1} parent=23 // pred_fallthru
          _
        // Predicated region
        $region29: #{tpu_custom_call.1} parent=23 // pred_check
          %p239 = pneg %p81
        $region30: #{tpu_custom_call.1} parent=23 // pred_check_branch
          %241 = sbr.rel (%p239) target = $region32
        $region31: #{tpu_custom_call.1} parent=23 // pred_region
          %s242 = sand.u32 %s21, 1
          %s243 = scalar_lea.sflag [#allocation8], %s242
          %s244 = sand.u32 %s71, 1
          %s245 = smul.addr %s244, 8
          %s246 = scalar_lea.vmem [#allocation7], %s245
          %s248 = ssub.s32 128, 128
          %249 = vsyncadd %s243, %s248
          %s250 = smul.addr %s28, 2
          %s251 = smul.addr %s250, 64
          %s252 = scalar_lea.hbm %s1, %s251
          %s253 = sshll.u32 %s246, 4
          %s254 = int_to_ptr.vmem [resolvable:$true] %s253
          %259 = dma.hbm_to_vmem [thread:$0]  %s252, 128, %s254, %s243, 64, 64, 4
        $region32: #{tpu_custom_call.1} parent=23 // pred_fallthru
          _
        // Predicated region
        $region33: #{tpu_custom_call.1} parent=23 // pred_check
          %p260 = pneg %p107
        $region34: #{tpu_custom_call.1} parent=23 // pred_check_branch
          %262 = sbr.rel (%p260) target = $region36
        $region35: #{tpu_custom_call.1} parent=23 // pred_region
          %s263 = sand.u32 %s21, 1
          %s264 = scalar_lea.sflag [#allocation8], %s263
          %s265 = sand.u32 %s97, 1
          %s266 = smul.addr %s265, 8
          %s267 = scalar_lea.vmem [#allocation9], %s266
          %s269 = ssub.s32 128, 128
          %270 = vsyncadd %s264, %s269
          %s271 = smul.addr %s28, 2
          %s272 = smul.addr %s271, 64
          %s273 = scalar_lea.hbm %s2, %s272
          %s274 = sshll.u32 %s267, 4
          %s275 = int_to_ptr.vmem [resolvable:$true] %s274
          %280 = dma.hbm_to_vmem [thread:$0]  %s273, 128, %s275, %s264, 64, 64, 4
        $region36: #{tpu_custom_call.1} parent=23 // pred_fallthru
          _
      $region24: #{tpu_custom_call.1} parent=5 // pred_fallthru
        _
      %p281 = scmp.le.s32.totalorder 1, %s21
      %p282 = scmp.lt.s32.totalorder %s21, 3
      %p283 = pnand %p281, %p282
      %p284 = pneg %p283
      // Predicated region
      $region37: #{tpu_custom_call.1} parent=5 // pred_check
        _
      $region38: #{tpu_custom_call.1} parent=5 // pred_check_branch
        %286 = sbr.rel (%p283) target = $region40
      $region39: #{tpu_custom_call.1} parent=5 // pred_region
        %s287 = ssub.s32 %s21, 1
        %s288 = sand.u32 %s48, 1
        %s289 = scalar_lea.sflag [#allocation5], %s288
        %s290 = sand.u32 %s48, 1
        %s291 = smul.addr %s290, 8
        %s292 = scalar_lea.vmem [#allocation4], %s291
        // Predicated region
        $region41: #{tpu_custom_call.1} parent=39 // pred_check
          %p293 = pneg %p61
        $region42: #{tpu_custom_call.1} parent=39 // pred_check_branch
          %295 = sbr.rel (%p293) target = $region44
        $region43: #{tpu_custom_call.1} parent=39 // pred_region
          %296 = dma.done %s289, 128
        $region44: #{tpu_custom_call.1} parent=39 // pred_fallthru
          _
        %s297 = sand.u32 %s26, 1
        %s298 = scalar_lea.sflag [#allocation8], %s297
        %s299 = sand.u32 %s74, 1
        %s300 = smul.addr %s299, 8
        %s301 = scalar_lea.vmem [#allocation7], %s300
        // Predicated region
        $region45: #{tpu_custom_call.1} parent=39 // pred_check
          %p302 = pneg %p87
        $region46: #{tpu_custom_call.1} parent=39 // pred_check_branch
          %304 = sbr.rel (%p302) target = $region48
        $region47: #{tpu_custom_call.1} parent=39 // pred_region
          %305 = dma.done %s298, 128
        $region48: #{tpu_custom_call.1} parent=39 // pred_fallthru
          _
        %s306 = sand.u32 %s26, 1
        %s307 = scalar_lea.sflag [#allocation8], %s306
        %s308 = sand.u32 %s100, 1
        %s309 = smul.addr %s308, 8
        %s310 = scalar_lea.vmem [#allocation9], %s309
        // Predicated region
        $region49: #{tpu_custom_call.1} parent=39 // pred_check
          %p311 = pneg %p113
        $region50: #{tpu_custom_call.1} parent=39 // pred_check_branch
          %313 = sbr.rel (%p311) target = $region52
        $region51: #{tpu_custom_call.1} parent=39 // pred_region
          %314 = dma.done %s307, 128
        $region52: #{tpu_custom_call.1} parent=39 // pred_fallthru
          _
        // Predicated region
        $region53: #{tpu_custom_call.1} parent=39 // pred_check
          %p315 = pneg %p155
        $region54: #{tpu_custom_call.1} parent=39 // pred_check_branch
          %317 = sbr.rel (%p315) target = $region56
        $region55: #{tpu_custom_call.1} parent=39 // pred_region
          %318 = dma.done [#allocation11], 64
        $region56: #{tpu_custom_call.1} parent=39 // pred_fallthru
          _
        %s319 = sand.u32 %s48, 1
        %s320 = scalar_lea.sflag [#allocation5], %s319
        %s321 = sand.u32 %s48, 1
        %s322 = smul.addr %s321, 8
        %s323 = scalar_lea.vmem [#allocation4], %s322
        %p324 = pneg %p61
        %p325 = pneg %p58
        %s326 = sand.u32 %s26, 1
        %s327 = scalar_lea.sflag [#allocation8], %s326
        %s328 = sand.u32 %s74, 1
        %s329 = smul.addr %s328, 8
        %s330 = scalar_lea.vmem [#allocation7], %s329
        %p331 = pneg %p87
        %p332 = pneg %p84
        %s333 = sand.u32 %s26, 1
        %s334 = scalar_lea.sflag [#allocation8], %s333
        %s335 = sand.u32 %s100, 1
        %s336 = smul.addr %s335, 8
        %s337 = scalar_lea.vmem [#allocation9], %s336
        %p338 = pneg %p113
        %p339 = pneg %p110
        %p340 = pneg %p134
        %p341 = pneg %p131
        %p342 = pneg %p155
        %p343 = pneg %p152
        %p344 = pneg %p183
        %p345 = pneg %p180
        %s346 = sand.u32 %s170, 1
        %s347 = scalar_lea.sflag [#allocation6], %s346
        %s348 = sand.u32 %s170, 1
        %s349 = smul.addr %s348, 16
        %s350 = scalar_lea.vmem [#allocation12], %s349
        %s351 = smul.u32 2, %s31
        %s352 = smul.u32 2, %s31
        %p354 = scmp.eq.s32.totalorder %s31, 0
        // Predicated region
        $region57: #{tpu_custom_call.1} parent=39 // pred_check
          %p355 = pneg %p354
        $region58: #{tpu_custom_call.1} parent=39 // pred_check_branch
          %357 = sbr.rel (%p355) target = $region60
        $region59: #{tpu_custom_call.1} parent=39 // pred_region
          %v358 = vld [vmem:[%s3] sm:$0xf]
          %v359 = vld [vmem:[%s301] sm:$0xf]
          %v360 = vld [vmem:[%s301 + $0x4] sm:$0xf]
          %v363 = vunpack.c.l.b16 %v359
          %v364 = vunpack.c.l.b16 %v360
          %v365 = vpack.c.b16 %v364, %v363
          %vm367 = vcmask 130048
          %v369 = vsel %vm367, %v358, 0
          %371 = vmatprep.subr.bf16.mxu0 0
          %372 = vmatpush1.bf16.msra.mxu0 0
          %373 = vmatprep.subr.bf16.mxu0 0
          %374 = vmatpush1.bf16.msra.mxu0 0
          %375 = vmatprep.subr.bf16.mxu0 0
          %376 = vmatpush1.bf16.msra.mxu0 0
          %377 = vmatprep.subr.bf16.mxu0 0
          %378 = vmatpush1.bf16.msra.mxu0 0
          %379 = vmatprep.subr.bf16.mxu0 0
          %380 = vmatpush1.bf16.msra.mxu0 0
          %381 = vmatprep.subr.bf16.mxu0 0
          %382 = vmatpush1.bf16.msra.mxu0 0
          %383 = vmatprep.subr.bf16.mxu0 0
          %384 = vmatpush1.bf16.msra.mxu0 0
          %385 = vmatprep.subr.bf16.mxu0 0
          %386 = vmatpush1.bf16.msra.mxu0 %v365
          %387 = vmatprep.subr.bf16.mxu0 0
          %388 = vmatpush2.bf16.msra.mxu0 0
          %389 = vmatprep.subr.bf16.mxu0 0
          %390 = vmatpush2.bf16.msra.mxu0 0
          %391 = vmatprep.subr.bf16.mxu0 0
          %392 = vmatpush2.bf16.msra.mxu0 0
          %393 = vmatprep.subr.bf16.mxu0 0
          %394 = vmatpush2.bf16.msra.mxu0 0
          %395 = vmatprep.subr.bf16.mxu0 0
          %396 = vmatpush2.bf16.msra.mxu0 0
          %397 = vmatprep.subr.bf16.mxu0 0
          %398 = vmatpush2.bf16.msra.mxu0 0
          %399 = vmatprep.subr.bf16.mxu0 0
          %400 = vmatpush2.bf16.msra.mxu0 0
          %401 = vmatprep.subr.bf16.mxu0 0
          %402 = vmatpush2.bf16.msra.mxu0 0
          %403 = vmatprep.mubr.bf16.mxu0 0
          %404 = vmatmul.mubr.bf16.gmra.mxu0 %v369
          %v405 = vpop.f32.mrf.mxu0
          %v406 = vadd.f32 0.0, %v405
          %v407 = vpop.f32.mrf.mxu0
          %v408 = vpop.f32.mrf.mxu0
          %v409 = vpop.f32.mrf.mxu0
          %410 = vdwg.mxu0
          %v411 = vld [vmem:[#allocation10] sm:$0xf]
          %v412 = vld [vmem:[%s310] sm:$0xf]
          %v413 = vld [vmem:[%s310 + $0x4] sm:$0xf]
          %v416 = vunpack.c.l.b16 %v412
          %v417 = vunpack.c.l.b16 %v413
          %v418 = vpack.c.b16 %v417, %v416
          %v421 = vsel %vm367, %v411, 0
          %423 = vmatprep.subr.bf16.mxu0 0
          %424 = vmatpush1.bf16.msra.mxu0 0
          %425 = vmatprep.subr.bf16.mxu0 0
          %426 = vmatpush1.bf16.msra.mxu0 0
          %427 = vmatprep.subr.bf16.mxu0 0
          %428 = vmatpush1.bf16.msra.mxu0 0
          %429 = vmatprep.subr.bf16.mxu0 0
          %430 = vmatpush1.bf16.msra.mxu0 0
          %431 = vmatprep.subr.bf16.mxu0 0
          %432 = vmatpush1.bf16.msra.mxu0 0
          %433 = vmatprep.subr.bf16.mxu0 0
          %434 = vmatpush1.bf16.msra.mxu0 0
          %435 = vmatprep.subr.bf16.mxu0 0
          %436 = vmatpush1.bf16.msra.mxu0 0
          %437 = vmatprep.subr.bf16.mxu0 0
          %438 = vmatpush1.bf16.msra.mxu0 %v418
          %439 = vmatprep.subr.bf16.mxu0 0
          %440 = vmatpush2.bf16.msra.mxu0 0
          %441 = vmatprep.subr.bf16.mxu0 0
          %442 = vmatpush2.bf16.msra.mxu0 0
          %443 = vmatprep.subr.bf16.mxu0 0
          %444 = vmatpush2.bf16.msra.mxu0 0
          %445 = vmatprep.subr.bf16.mxu0 0
          %446 = vmatpush2.bf16.msra.mxu0 0
          %447 = vmatprep.subr.bf16.mxu0 0
          %448 = vmatpush2.bf16.msra.mxu0 0
          %449 = vmatprep.subr.bf16.mxu0 0
          %450 = vmatpush2.bf16.msra.mxu0 0
          %451 = vmatprep.subr.bf16.mxu0 0
          %452 = vmatpush2.bf16.msra.mxu0 0
          %453 = vmatprep.subr.bf16.mxu0 0
          %454 = vmatpush2.bf16.msra.mxu0 0
          %455 = vmatprep.mubr.bf16.mxu0 0
          %456 = vmatmul.mubr.bf16.gmra.mxu0 %v421
          %v457 = vpop.f32.mrf.mxu0
          %v458 = vadd.f32 0.0, %v457
          %v459 = vpop.f32.mrf.mxu0
          %v460 = vpop.f32.mrf.mxu0
          %v461 = vpop.f32.mrf.mxu0
          %462 = vdwg.mxu0
          %v463 = vmul.f32 %v406, 0.17677669
          %v464 = vpack.c.bf16 %v463, %v463
          %465 = vst [vmem:[#allocation2] sm:$0xf] %v464
          %v466 = vpack.c.bf16 %v458, %v458
          %467 = vst [vmem:[#allocation3] sm:$0xf] %v466
        $region60: #{tpu_custom_call.1} parent=39 // pred_fallthru
          _
        %v468 = vld [vmem:[%s292] sm:$0xf]
        %v469 = vld [vmem:[%s292 + $0x4] sm:$0xf]
        %v470 = vld [vmem:[#allocation2] sm:$0xf]
        %v471 = vld [vmem:[#allocation3] sm:$0xf]
        %v474 = vunpack.c.l.b16 %v468
        %v475 = vunpack.c.l.b16 %v469
        %v476 = vpack.c.b16 %v475, %v474
        %vm477 = vcmask 261120
        %v479 = vsel %vm477, %v476, 0
        %v482 = vsel %vm477, %v470, 0
        %484 = vmatprep.subr.bf16.mxu0 0
        %485 = vmatpush1.bf16.xpose.msra.mxu0 0
        %486 = vmatprep.subr.bf16.mxu0 0
        %487 = vmatpush1.bf16.xpose.msra.mxu0 0
        %488 = vmatprep.subr.bf16.mxu0 0
        %489 = vmatpush1.bf16.xpose.msra.mxu0 0
        %490 = vmatprep.subr.bf16.mxu0 0
        %491 = vmatpush1.bf16.xpose.msra.mxu0 0
        %492 = vmatprep.subr.bf16.mxu0 0
        %493 = vmatpush1.bf16.xpose.msra.mxu0 0
        %494 = vmatprep.subr.bf16.mxu0 0
        %495 = vmatpush1.bf16.xpose.msra.mxu0 0
        %496 = vmatprep.subr.bf16.mxu0 0
        %497 = vmatpush1.bf16.xpose.msra.mxu0 0
        %498 = vmatprep.subr.bf16.mxu0 0
        %499 = vmatpush1.bf16.xpose.msra.mxu0 %v482
        %500 = vmatprep.subr.bf16.mxu0 0
        %501 = vmatpush2.bf16.xpose.msra.mxu0 0
        %502 = vmatprep.subr.bf16.mxu0 0
        %503 = vmatpush2.bf16.xpose.msra.mxu0 0
        %504 = vmatprep.subr.bf16.mxu0 0
        %505 = vmatpush2.bf16.xpose.msra.mxu0 0
        %506 = vmatprep.subr.bf16.mxu0 0
        %507 = vmatpush2.bf16.xpose.msra.mxu0 0
        %508 = vmatprep.subr.bf16.mxu0 0
        %509 = vmatpush2.bf16.xpose.msra.mxu0 0
        %510 = vmatprep.subr.bf16.mxu0 0
        %511 = vmatpush2.bf16.xpose.msra.mxu0 0
        %512 = vmatprep.subr.bf16.mxu0 0
        %513 = vmatpush2.bf16.xpose.msra.mxu0 0
        %514 = vmatprep.subr.bf16.mxu0 0
        %515 = vmatpush2.bf16.xpose.msra.mxu0 0
        %516 = vmatprep.mubr.bf16.mxu0 0
        %517 = vmatmul.mubr.bf16.gmra.mxu0 %v479
        %v518 = vpop.f32.mrf.mxu0
        %v519 = vadd.f32 0.0, %v518
        %v520 = vpop.f32.mrf.mxu0
        %v521 = vpop.f32.mrf.mxu0
        %v522 = vadd.f32 0.0, %v521
        %v523 = vpop.f32.mrf.mxu0
        %524 = vdwg.mxu0
        %vm525 = vcmask 64512
        %v526 = vsel %vm525, %v519, -inf
        %527 = vmax.xlane.f32.xlu0 %v526
        %v528 = vpop.xlane.xlu0 %527
        %v529 = vsel %vm525, %v522, -inf
        %530 = vmax.xlane.f32.xlu0 %v529
        %v531 = vpop.xlane.xlu0 %530
        %v532 = vsub.f32 %v519, %v528
        %v533 = vsub.f32 %v522, %v531
        %v534 = vmul.f32 %v532, 1.442695
        %v535 = vpow.pop %v534
        %v536 = vmul.f32 %v533, 1.442695
        %v537 = vpow.pop %v536
        %v538 = vsel %vm525, %v535, 0.0
        %539 = vadd.xlane.f32.xlu0 %v538
        %v540 = vpop.xlane.xlu0 %539
        %v541 = vsel %vm525, %v537, 0.0
        %542 = vadd.xlane.f32.xlu0 %v541
        %v543 = vpop.xlane.xlu0 %542
        %v544 = vrcp.pop %v540
        %v545 = vrcp.pop %v543
        %v546 = vmul.f32 %v535, %v544
        %v547 = vmul.f32 %v537, %v545
        %v548 = vpack.c.bf16 %v547, %v546
        %v550 = vsel %vm525, %v548, 0
        %vm552 = vcmask 1043456
        %v554 = vsel %vm552, %v471, 0
        %556 = vmatprep.subr.bf16.mxu0 0
        %557 = vmatpush1.bf16.msra.mxu0 0
        %558 = vmatprep.subr.bf16.mxu0 0
        %559 = vmatpush1.bf16.msra.mxu0 0
        %560 = vmatprep.subr.bf16.mxu0 0
        %561 = vmatpush1.bf16.msra.mxu0 0
        %562 = vmatprep.subr.bf16.mxu0 0
        %563 = vmatpush1.bf16.msra.mxu0 0
        %564 = vmatprep.subr.bf16.mxu0 0
        %565 = vmatpush1.bf16.msra.mxu0 0
        %566 = vmatprep.subr.bf16.mxu0 0
        %567 = vmatpush1.bf16.msra.mxu0 0
        %568 = vmatprep.subr.bf16.mxu0 0
        %569 = vmatpush1.bf16.msra.mxu0 0
        %570 = vmatprep.subr.bf16.mxu0 0
        %571 = vmatpush1.bf16.msra.mxu0 %v554
        %572 = vmatprep.subr.bf16.mxu0 0
        %573 = vmatpush2.bf16.msra.mxu0 0
        %574 = vmatprep.subr.bf16.mxu0 0
        %575 = vmatpush2.bf16.msra.mxu0 0
        %576 = vmatprep.subr.bf16.mxu0 0
        %577 = vmatpush2.bf16.msra.mxu0 0
        %578 = vmatprep.subr.bf16.mxu0 0
        %579 = vmatpush2.bf16.msra.mxu0 0
        %580 = vmatprep.subr.bf16.mxu0 0
        %581 = vmatpush2.bf16.msra.mxu0 0
        %582 = vmatprep.subr.bf16.mxu0 0
        %583 = vmatpush2.bf16.msra.mxu0 0
        %584 = vmatprep.subr.bf16.mxu0 0
        %585 = vmatpush2.bf16.msra.mxu0 0
        %586 = vmatprep.subr.bf16.mxu0 0
        %587 = vmatpush2.bf16.msra.mxu0 0
        %588 = vmatprep.mubr.bf16.mxu0 0
        %589 = vmatmul.mubr.bf16.gmra.mxu0 %v550
        %v590 = vpop.f32.mrf.mxu0
        %v591 = vadd.f32 0.0, %v590
        %v592 = vpop.f32.mrf.mxu0
        %v593 = vpop.f32.mrf.mxu0
        %v594 = vadd.f32 0.0, %v593
        %v595 = vpop.f32.mrf.mxu0
        %596 = vdwg.mxu0
        %597 = vrot.lane.b32.xlu0 %v476, 96
        %v598 = vpop.permute.xlu0 %597
        %v600 = vunpack.c.l.b16 %v470
        %v601 = vpack.c.b16 %v600, %v600
        %602 = vrot.lane.b32.xlu0 %v601, 96
        %v603 = vpop.permute.xlu0 %602
        %v605 = vsel %vm477, %v598, 0
        %v608 = vsel %vm477, %v603, 0
        %610 = vmatprep.subr.bf16.mxu0 0
        %611 = vmatpush1.bf16.xpose.msra.mxu0 0
        %612 = vmatprep.subr.bf16.mxu0 0
        %613 = vmatpush1.bf16.xpose.msra.mxu0 0
        %614 = vmatprep.subr.bf16.mxu0 0
        %615 = vmatpush1.bf16.xpose.msra.mxu0 0
        %616 = vmatprep.subr.bf16.mxu0 0
        %617 = vmatpush1.bf16.xpose.msra.mxu0 0
        %618 = vmatprep.subr.bf16.mxu0 0
        %619 = vmatpush1.bf16.xpose.msra.mxu0 0
        %620 = vmatprep.subr.bf16.mxu0 0
        %621 = vmatpush1.bf16.xpose.msra.mxu0 0
        %622 = vmatprep.subr.bf16.mxu0 0
        %623 = vmatpush1.bf16.xpose.msra.mxu0 0
        %624 = vmatprep.subr.bf16.mxu0 0
        %625 = vmatpush1.bf16.xpose.msra.mxu0 %v608
        %626 = vmatprep.subr.bf16.mxu0 0
        %627 = vmatpush2.bf16.xpose.msra.mxu0 0
        %628 = vmatprep.subr.bf16.mxu0 0
        %629 = vmatpush2.bf16.xpose.msra.mxu0 0
        %630 = vmatprep.subr.bf16.mxu0 0
        %631 = vmatpush2.bf16.xpose.msra.mxu0 0
        %632 = vmatprep.subr.bf16.mxu0 0
        %633 = vmatpush2.bf16.xpose.msra.mxu0 0
        %634 = vmatprep.subr.bf16.mxu0 0
        %635 = vmatpush2.bf16.xpose.msra.mxu0 0
        %636 = vmatprep.subr.bf16.mxu0 0
        %637 = vmatpush2.bf16.xpose.msra.mxu0 0
        %638 = vmatprep.subr.bf16.mxu0 0
        %639 = vmatpush2.bf16.xpose.msra.mxu0 0
        %640 = vmatprep.subr.bf16.mxu0 0
        %641 = vmatpush2.bf16.xpose.msra.mxu0 0
        %642 = vmatprep.mubr.bf16.mxu0 0
        %643 = vmatmul.mubr.bf16.gmra.mxu0 %v605
        %v644 = vpop.f32.mrf.mxu0
        %v645 = vadd.f32 0.0, %v644
        %v646 = vpop.f32.mrf.mxu0
        %v647 = vpop.f32.mrf.mxu0
        %v648 = vadd.f32 0.0, %v647
        %v649 = vpop.f32.mrf.mxu0
        %650 = vdwg.mxu0
        %v651 = vsel %vm525, %v645, -inf
        %652 = vmax.xlane.f32.xlu0 %v651
        %v653 = vpop.xlane.xlu0 %652
        %v654 = vsel %vm525, %v648, -inf
        %655 = vmax.xlane.f32.xlu0 %v654
        %v656 = vpop.xlane.xlu0 %655
        %v657 = vsub.f32 %v645, %v653
        %v658 = vsub.f32 %v648, %v656
        %v659 = vmul.f32 %v657, 1.442695
        %v660 = vpow.pop %v659
        %v661 = vmul.f32 %v658, 1.442695
        %v662 = vpow.pop %v661
        %v663 = vsel %vm525, %v660, 0.0
        %664 = vadd.xlane.f32.xlu0 %v663
        %v665 = vpop.xlane.xlu0 %664
        %v666 = vsel %vm525, %v662, 0.0
        %667 = vadd.xlane.f32.xlu0 %v666
        %v668 = vpop.xlane.xlu0 %667
        %v669 = vrcp.pop %v665
        %v670 = vrcp.pop %v668
        %v671 = vmul.f32 %v660, %v669
        %v672 = vmul.f32 %v662, %v670
        %v673 = vpack.c.bf16 %v672, %v671
        %v675 = vunpack.c.l.b16 %v471
        %v676 = vpack.c.b16 %v675, %v675
        %677 = vrot.lane.b32.xlu0 %v676, 96
        %v678 = vpop.permute.xlu0 %677
        %v680 = vsel %vm525, %v673, 0
        %v683 = vsel %vm552, %v678, 0
        %685 = vmatprep.subr.bf16.mxu0 0
        %686 = vmatpush1.bf16.msra.mxu0 0
        %687 = vmatprep.subr.bf16.mxu0 0
        %688 = vmatpush1.bf16.msra.mxu0 0
        %689 = vmatprep.subr.bf16.mxu0 0
        %690 = vmatpush1.bf16.msra.mxu0 0
        %691 = vmatprep.subr.bf16.mxu0 0
        %692 = vmatpush1.bf16.msra.mxu0 0
        %693 = vmatprep.subr.bf16.mxu0 0
        %694 = vmatpush1.bf16.msra.mxu0 0
        %695 = vmatprep.subr.bf16.mxu0 0
        %696 = vmatpush1.bf16.msra.mxu0 0
        %697 = vmatprep.subr.bf16.mxu0 0
        %698 = vmatpush1.bf16.msra.mxu0 0
        %699 = vmatprep.subr.bf16.mxu0 0
        %700 = vmatpush1.bf16.msra.mxu0 %v683
        %701 = vmatprep.subr.bf16.mxu0 0
        %702 = vmatpush2.bf16.msra.mxu0 0
        %703 = vmatprep.subr.bf16.mxu0 0
        %704 = vmatpush2.bf16.msra.mxu0 0
        %705 = vmatprep.subr.bf16.mxu0 0
        %706 = vmatpush2.bf16.msra.mxu0 0
        %707 = vmatprep.subr.bf16.mxu0 0
        %708 = vmatpush2.bf16.msra.mxu0 0
        %709 = vmatprep.subr.bf16.mxu0 0
        %710 = vmatpush2.bf16.msra.mxu0 0
        %711 = vmatprep.subr.bf16.mxu0 0
        %712 = vmatpush2.bf16.msra.mxu0 0
        %713 = vmatprep.subr.bf16.mxu0 0
        %714 = vmatpush2.bf16.msra.mxu0 0
        %715 = vmatprep.subr.bf16.mxu0 0
        %716 = vmatpush2.bf16.msra.mxu0 0
        %717 = vmatprep.mubr.bf16.mxu0 0
        %718 = vmatmul.mubr.bf16.gmra.mxu0 %v680
        %v719 = vpop.f32.mrf.mxu0
        %v720 = vadd.f32 0.0, %v719
        %v721 = vpop.f32.mrf.mxu0
        %v722 = vpop.f32.mrf.mxu0
        %v723 = vadd.f32 0.0, %v722
        %v724 = vpop.f32.mrf.mxu0
        %725 = vdwg.mxu0
        %726 = vrot.lane.b32.xlu0 %v476, 64
        %v727 = vpop.permute.xlu0 %726
        %728 = vrot.lane.b32.xlu0 %v601, 64
        %v729 = vpop.permute.xlu0 %728
        %v731 = vsel %vm477, %v727, 0
        %v734 = vsel %vm477, %v729, 0
        %736 = vmatprep.subr.bf16.mxu0 0
        %737 = vmatpush1.bf16.xpose.msra.mxu0 0
        %738 = vmatprep.subr.bf16.mxu0 0
        %739 = vmatpush1.bf16.xpose.msra.mxu0 0
        %740 = vmatprep.subr.bf16.mxu0 0
        %741 = vmatpush1.bf16.xpose.msra.mxu0 0
        %742 = vmatprep.subr.bf16.mxu0 0
        %743 = vmatpush1.bf16.xpose.msra.mxu0 0
        %744 = vmatprep.subr.bf16.mxu0 0
        %745 = vmatpush1.bf16.xpose.msra.mxu0 0
        %746 = vmatprep.subr.bf16.mxu0 0
        %747 = vmatpush1.bf16.xpose.msra.mxu0 0
        %748 = vmatprep.subr.bf16.mxu0 0
        %749 = vmatpush1.bf16.xpose.msra.mxu0 0
        %750 = vmatprep.subr.bf16.mxu0 0
        %751 = vmatpush1.bf16.xpose.msra.mxu0 %v734
        %752 = vmatprep.subr.bf16.mxu0 0
        %753 = vmatpush2.bf16.xpose.msra.mxu0 0
        %754 = vmatprep.subr.bf16.mxu0 0
        %755 = vmatpush2.bf16.xpose.msra.mxu0 0
        %756 = vmatprep.subr.bf16.mxu0 0
        %757 = vmatpush2.bf16.xpose.msra.mxu0 0
        %758 = vmatprep.subr.bf16.mxu0 0
        %759 = vmatpush2.bf16.xpose.msra.mxu0 0
        %760 = vmatprep.subr.bf16.mxu0 0
        %761 = vmatpush2.bf16.xpose.msra.mxu0 0
        %762 = vmatprep.subr.bf16.mxu0 0
        %763 = vmatpush2.bf16.xpose.msra.mxu0 0
        %764 = vmatprep.subr.bf16.mxu0 0
        %765 = vmatpush2.bf16.xpose.msra.mxu0 0
        %766 = vmatprep.subr.bf16.mxu0 0
        %767 = vmatpush2.bf16.xpose.msra.mxu0 0
        %768 = vmatprep.mubr.bf16.mxu0 0
        %769 = vmatmul.mubr.bf16.gmra.mxu0 %v731
        %v770 = vpop.f32.mrf.mxu0
        %v771 = vadd.f32 0.0, %v770
        %v772 = vpop.f32.mrf.mxu0
        %v773 = vpop.f32.mrf.mxu0
        %v774 = vadd.f32 0.0, %v773
        %v775 = vpop.f32.mrf.mxu0
        %776 = vdwg.mxu0
        %v777 = vsel %vm525, %v771, -inf
        %778 = vmax.xlane.f32.xlu0 %v777
        %v779 = vpop.xlane.xlu0 %778
        %v780 = vsel %vm525, %v774, -inf
        %781 = vmax.xlane.f32.xlu0 %v780
        %v782 = vpop.xlane.xlu0 %781
        %v783 = vsub.f32 %v771, %v779
        %v784 = vsub.f32 %v774, %v782
        %v785 = vmul.f32 %v783, 1.442695
        %v786 = vpow.pop %v785
        %v787 = vmul.f32 %v784, 1.442695
        %v788 = vpow.pop %v787
        %v789 = vsel %vm525, %v786, 0.0
        %790 = vadd.xlane.f32.xlu0 %v789
        %v791 = vpop.xlane.xlu0 %790
        %v792 = vsel %vm525, %v788, 0.0
        %793 = vadd.xlane.f32.xlu0 %v792
        %v794 = vpop.xlane.xlu0 %793
        %v795 = vrcp.pop %v791
        %v796 = vrcp.pop %v794
        %v797 = vmul.f32 %v786, %v795
        %v798 = vmul.f32 %v788, %v796
        %v799 = vpack.c.bf16 %v798, %v797
        %800 = vrot.lane.b32.xlu0 %v676, 64
        %v801 = vpop.permute.xlu0 %800
        %v803 = vsel %vm525, %v799, 0
        %v806 = vsel %vm552, %v801, 0
        %808 = vmatprep.subr.bf16.mxu0 0
        %809 = vmatpush1.bf16.msra.mxu0 0
        %810 = vmatprep.subr.bf16.mxu0 0
        %811 = vmatpush1.bf16.msra.mxu0 0
        %812 = vmatprep.subr.bf16.mxu0 0
        %813 = vmatpush1.bf16.msra.mxu0 0
        %814 = vmatprep.subr.bf16.mxu0 0
        %815 = vmatpush1.bf16.msra.mxu0 0
        %816 = vmatprep.subr.bf16.mxu0 0
        %817 = vmatpush1.bf16.msra.mxu0 0
        %818 = vmatprep.subr.bf16.mxu0 0
        %819 = vmatpush1.bf16.msra.mxu0 0
        %820 = vmatprep.subr.bf16.mxu0 0
        %821 = vmatpush1.bf16.msra.mxu0 0
        %822 = vmatprep.subr.bf16.mxu0 0
        %823 = vmatpush1.bf16.msra.mxu0 %v806
        %824 = vmatprep.subr.bf16.mxu0 0
        %825 = vmatpush2.bf16.msra.mxu0 0
        %826 = vmatprep.subr.bf16.mxu0 0
        %827 = vmatpush2.bf16.msra.mxu0 0
        %828 = vmatprep.subr.bf16.mxu0 0
        %829 = vmatpush2.bf16.msra.mxu0 0
        %830 = vmatprep.subr.bf16.mxu0 0
        %831 = vmatpush2.bf16.msra.mxu0 0
        %832 = vmatprep.subr.bf16.mxu0 0
        %833 = vmatpush2.bf16.msra.mxu0 0
        %834 = vmatprep.subr.bf16.mxu0 0
        %835 = vmatpush2.bf16.msra.mxu0 0
        %836 = vmatprep.subr.bf16.mxu0 0
        %837 = vmatpush2.bf16.msra.mxu0 0
        %838 = vmatprep.subr.bf16.mxu0 0
        %839 = vmatpush2.bf16.msra.mxu0 0
        %840 = vmatprep.mubr.bf16.mxu0 0
        %841 = vmatmul.mubr.bf16.gmra.mxu0 %v803
        %v842 = vpop.f32.mrf.mxu0
        %v843 = vadd.f32 0.0, %v842
        %v844 = vpop.f32.mrf.mxu0
        %v845 = vpop.f32.mrf.mxu0
        %v846 = vadd.f32 0.0, %v845
        %v847 = vpop.f32.mrf.mxu0
        %848 = vdwg.mxu0
        %849 = vrot.lane.b32.xlu0 %v476, 32
        %v850 = vpop.permute.xlu0 %849
        %851 = vrot.lane.b32.xlu0 %v601, 32
        %v852 = vpop.permute.xlu0 %851
        %v854 = vsel %vm477, %v850, 0
        %v857 = vsel %vm477, %v852, 0
        %859 = vmatprep.subr.bf16.mxu0 0
        %860 = vmatpush1.bf16.xpose.msra.mxu0 0
        %861 = vmatprep.subr.bf16.mxu0 0
        %862 = vmatpush1.bf16.xpose.msra.mxu0 0
        %863 = vmatprep.subr.bf16.mxu0 0
        %864 = vmatpush1.bf16.xpose.msra.mxu0 0
        %865 = vmatprep.subr.bf16.mxu0 0
        %866 = vmatpush1.bf16.xpose.msra.mxu0 0
        %867 = vmatprep.subr.bf16.mxu0 0
        %868 = vmatpush1.bf16.xpose.msra.mxu0 0
        %869 = vmatprep.subr.bf16.mxu0 0
        %870 = vmatpush1.bf16.xpose.msra.mxu0 0
        %871 = vmatprep.subr.bf16.mxu0 0
        %872 = vmatpush1.bf16.xpose.msra.mxu0 0
        %873 = vmatprep.subr.bf16.mxu0 0
        %874 = vmatpush1.bf16.xpose.msra.mxu0 %v857
        %875 = vmatprep.subr.bf16.mxu0 0
        %876 = vmatpush2.bf16.xpose.msra.mxu0 0
        %877 = vmatprep.subr.bf16.mxu0 0
        %878 = vmatpush2.bf16.xpose.msra.mxu0 0
        %879 = vmatprep.subr.bf16.mxu0 0
        %880 = vmatpush2.bf16.xpose.msra.mxu0 0
        %881 = vmatprep.subr.bf16.mxu0 0
        %882 = vmatpush2.bf16.xpose.msra.mxu0 0
        %883 = vmatprep.subr.bf16.mxu0 0
        %884 = vmatpush2.bf16.xpose.msra.mxu0 0
        %885 = vmatprep.subr.bf16.mxu0 0
        %886 = vmatpush2.bf16.xpose.msra.mxu0 0
        %887 = vmatprep.subr.bf16.mxu0 0
        %888 = vmatpush2.bf16.xpose.msra.mxu0 0
        %889 = vmatprep.subr.bf16.mxu0 0
        %890 = vmatpush2.bf16.xpose.msra.mxu0 0
        %891 = vmatprep.mubr.bf16.mxu0 0
        %892 = vmatmul.mubr.bf16.gmra.mxu0 %v854
        %v893 = vpop.f32.mrf.mxu0
        %v894 = vadd.f32 0.0, %v893
        %v895 = vpop.f32.mrf.mxu0
        %v896 = vpop.f32.mrf.mxu0
        %v897 = vadd.f32 0.0, %v896
        %v898 = vpop.f32.mrf.mxu0
        %899 = vdwg.mxu0
        %v900 = vsel %vm525, %v894, -inf
        %901 = vmax.xlane.f32.xlu0 %v900
        %v902 = vpop.xlane.xlu0 %901
        %v903 = vsel %vm525, %v897, -inf
        %904 = vmax.xlane.f32.xlu0 %v903
        %v905 = vpop.xlane.xlu0 %904
        %v906 = vsub.f32 %v894, %v902
        %v907 = vsub.f32 %v897, %v905
        %v908 = vmul.f32 %v906, 1.442695
        %v909 = vpow.pop %v908
        %v910 = vmul.f32 %v907, 1.442695
        %v911 = vpow.pop %v910
        %v912 = vsel %vm525, %v909, 0.0
        %913 = vadd.xlane.f32.xlu0 %v912
        %v914 = vpop.xlane.xlu0 %913
        %v915 = vsel %vm525, %v911, 0.0
        %916 = vadd.xlane.f32.xlu0 %v915
        %v917 = vpop.xlane.xlu0 %916
        %v918 = vrcp.pop %v914
        %v919 = vrcp.pop %v917
        %v920 = vmul.f32 %v909, %v918
        %v921 = vmul.f32 %v911, %v919
        %v922 = vpack.c.bf16 %v921, %v920
        %923 = vrot.lane.b32.xlu0 %v676, 32
        %v924 = vpop.permute.xlu0 %923
        %v926 = vsel %vm525, %v922, 0
        %v929 = vsel %vm552, %v924, 0
        %931 = vmatprep.subr.bf16.mxu0 0
        %932 = vmatpush1.bf16.msra.mxu0 0
        %933 = vmatprep.subr.bf16.mxu0 0
        %934 = vmatpush1.bf16.msra.mxu0 0
        %935 = vmatprep.subr.bf16.mxu0 0
        %936 = vmatpush1.bf16.msra.mxu0 0
        %937 = vmatprep.subr.bf16.mxu0 0
        %938 = vmatpush1.bf16.msra.mxu0 0
        %939 = vmatprep.subr.bf16.mxu0 0
        %940 = vmatpush1.bf16.msra.mxu0 0
        %941 = vmatprep.subr.bf16.mxu0 0
        %942 = vmatpush1.bf16.msra.mxu0 0
        %943 = vmatprep.subr.bf16.mxu0 0
        %944 = vmatpush1.bf16.msra.mxu0 0
        %945 = vmatprep.subr.bf16.mxu0 0
        %946 = vmatpush1.bf16.msra.mxu0 %v929
        %947 = vmatprep.subr.bf16.mxu0 0
        %948 = vmatpush2.bf16.msra.mxu0 0
        %949 = vmatprep.subr.bf16.mxu0 0
        %950 = vmatpush2.bf16.msra.mxu0 0
        %951 = vmatprep.subr.bf16.mxu0 0
        %952 = vmatpush2.bf16.msra.mxu0 0
        %953 = vmatprep.subr.bf16.mxu0 0
        %954 = vmatpush2.bf16.msra.mxu0 0
        %955 = vmatprep.subr.bf16.mxu0 0
        %956 = vmatpush2.bf16.msra.mxu0 0
        %957 = vmatprep.subr.bf16.mxu0 0
        %958 = vmatpush2.bf16.msra.mxu0 0
        %959 = vmatprep.subr.bf16.mxu0 0
        %960 = vmatpush2.bf16.msra.mxu0 0
        %961 = vmatprep.subr.bf16.mxu0 0
        %962 = vmatpush2.bf16.msra.mxu0 0
        %963 = vmatprep.mubr.bf16.mxu0 0
        %964 = vmatmul.mubr.bf16.gmra.mxu0 %v926
        %v965 = vpop.f32.mrf.mxu0
        %v966 = vadd.f32 0.0, %v965
        %v967 = vpop.f32.mrf.mxu0
        %v968 = vpop.f32.mrf.mxu0
        %v969 = vadd.f32 0.0, %v968
        %v970 = vpop.f32.mrf.mxu0
        %971 = vdwg.mxu0
        %974 = vrot.lane.b32.xlu0 %v720, 32
        %v975 = vpop.permute.xlu0 %974
        %976 = vrot.lane.b32.xlu0 %v723, 32
        %v977 = vpop.permute.xlu0 %976
        %982 = vrot.lane.b32.xlu0 %v843, 64
        %v983 = vpop.permute.xlu0 %982
        %984 = vrot.lane.b32.xlu0 %v846, 64
        %v985 = vpop.permute.xlu0 %984
        %990 = vrot.lane.b32.xlu0 %v966, 96
        %v991 = vpop.permute.xlu0 %990
        %992 = vrot.lane.b32.xlu0 %v969, 96
        %v993 = vpop.permute.xlu0 %992
        %v996 = vsel %vm477, %v591, %v975
        %v997 = vsel %vm477, %v594, %v977
        %vm998 = vcmask 523264
        %v999 = vsel %vm998, %v996, %v983
        %v1000 = vsel %vm998, %v997, %v985
        %vm1001 = vcmask 785408
        %v1002 = vsel %vm1001, %v999, %v991
        %v1003 = vsel %vm1001, %v1000, %v993
        %1004 = vst [vmem:[%s350] sm:$0xff] %v1002
        %1005 = vst [vmem:[%s350 + $0x8] sm:$0xff] %v1003
        %s1006 = sand.u32 %s170, 1
        %s1007 = scalar_lea.sflag [#allocation6], %s1006
        %s1008 = sand.u32 %s170, 1
        %s1009 = smul.addr %s1008, 16
        %s1010 = scalar_lea.vmem [#allocation12], %s1009
        // Predicated region
        $region61: #{tpu_custom_call.1} parent=39 // pred_check
          %p1011 = pneg %p180
        $region62: #{tpu_custom_call.1} parent=39 // pred_check_branch
          %1013 = sbr.rel (%p1011) target = $region64
        $region63: #{tpu_custom_call.1} parent=39 // pred_region
          %s1014 = smul.u32 2, %s31
          %s1016 = ssub.s32 256, 256
          %1017 = vsyncadd %s1007, %s1016
          %s1018 = smul.addr %s30, 2
          %s1019 = sadd.s32 %s1014, %s1018
          %s1020 = smul.addr %s1019, 128
          %s1021 = scalar_lea.hbm %s5, %s1020
          %s1022 = sshll.u32 %s1010, 4
          %s1023 = int_to_ptr.vmem [resolvable:$true] %s1022
          %1028 = dma.vmem_to_hbm [thread:$0]  %s1023, 256, %s1021, %s1007, 128, 128, 8
        $region64: #{tpu_custom_call.1} parent=39 // pred_fallthru
          _
      $region40: #{tpu_custom_call.1} parent=5 // pred_fallthru
        _
      %p1029 = scmp.le.s32.totalorder 2, %s21
      // Predicated region
      $region65: #{tpu_custom_call.1} parent=5 // pred_check
        %p1030 = pneg %p1029
      $region66: #{tpu_custom_call.1} parent=5 // pred_check_branch
        %1032 = sbr.rel (%p1030) target = $region68
      $region67: #{tpu_custom_call.1} parent=5 // pred_region
        %s1033 = ssub.s32 %s21, 2
        // Predicated region
        $region69: #{tpu_custom_call.1} parent=67 // pred_check
          %p1034 = pneg %p186
        $region70: #{tpu_custom_call.1} parent=67 // pred_check_branch
          %1036 = sbr.rel (%p1034) target = $region72
        $region71: #{tpu_custom_call.1} parent=67 // pred_region
          %s1037 = sand.u32 %s171, 1
          %s1038 = scalar_lea.sflag [#allocation6], %s1037
          %s1039 = sand.u32 %s171, 1
          %s1040 = smul.addr %s1039, 16
          %s1041 = scalar_lea.vmem [#allocation12], %s1040
          %1042 = dma.done %s1038, 256
        $region72: #{tpu_custom_call.1} parent=67 // pred_fallthru
          _
      $region68: #{tpu_custom_call.1} parent=5 // pred_fallthru
        _
    $region6: #{tpu_custom_call.1} parent=1 // loop_footer
      %s25 = sadd.s32 1, %s21
    $region7: #{tpu_custom_call.1} parent=1 // loop_footer_branch
      %20 = sbr.rel target = $region3
    $region8: #{tpu_custom_call.1} parent=1 // loop_exit
      _
    %1043 = vsyncpa [#allocation5], 1
    %s1044 = scalar_lea.sflag [#allocation5], 1
    %1045 = vsyncpa %s1044, 1
    %1046 = vsyncpa [#allocation8], 1
    %s1047 = scalar_lea.sflag [#allocation8], 1
    %1048 = vsyncpa %s1047, 1
    %1049 = vsyncpa [#allocation11], 1
    %1050 = vsyncpa [#allocation6], 1
    %s1051 = scalar_lea.sflag [#allocation6], 1
    %1052 = vsyncpa %s1051, 1

</llo_original>
